<compile_context>
chip_gen: v6e
topology: v6e:2x2x1
jax: 0.10.0
libtpu: 0.0.40
codegen_flags: <defaults>
</compile_context>

<pallas_src>
import jax
import jax.numpy as jnp
from jax.experimental import pallas as pl
from jax.experimental.pallas import tpu as pltpu

Z_SHAPE = 128
ACTION_SIZE = 1
OUTPUT_SHAPE = 120       # true RNN hidden size (PyTorch module)
H_PAD = 128              # lane-dense padded hidden size used inside the kernel
NUM_RNN_LAYERS = 2


def _leaky(v):
    # nn.LeakyReLU() default negative_slope = 0.01
    return jnp.where(v >= 0, v, 0.01 * v)


def rnn_mlp_kernel(prev_ref, act_ref, h_ref,
                   wz0_ref, wa0_ref, uh0_ref, b0_ref,
                   wz1_ref, uh1_ref, b1_ref,
                   w1_ref, bw1_ref, w2_ref, bw2_ref,
                   w3_ref, bw3_ref, w4_ref, bw4_ref,
                   y_ref, hn_ref,
                   h0_scr, h1_scr):
    f32 = jnp.float32
    T = prev_ref.shape[0]

    # Initialize the VMEM-resident hidden state carry (lane-dense, 128 wide).
    h0_scr[...] = h_ref[0]
    h1_scr[...] = h_ref[1]

    @pl.loop(0, T)
    def _(t):
        xz = prev_ref[t]                       # (B, 128)  lane-dense z-state
        xa = act_ref[t]                        # (B, A)    action column(s)
        h0 = h0_scr[...]
        h1 = h1_scr[...]

        if xa.shape[-1] == 1:
            # rank-1 action contribution: broadcasted mul/add on the VPU,
            # avoids a second 1/128-useful MXU K-pass from a K=129 matmul.
            act_term = xa * wa0_ref[...]
        else:
            act_term = jnp.dot(xa, wa0_ref[...], preferred_element_type=f32)

        # --- 2-layer Elman RNN step, tanh nonlinearity (padded to 128 lanes;
        #     tail lanes stay exactly zero since weights/biases are zero there).
        h0n = jnp.tanh(jnp.dot(xz, wz0_ref[...], preferred_element_type=f32)
                       + act_term
                       + jnp.dot(h0, uh0_ref[...], preferred_element_type=f32)
                       + b0_ref[...])
        h1n = jnp.tanh(jnp.dot(h0n, wz1_ref[...], preferred_element_type=f32)
                       + jnp.dot(h1, uh1_ref[...], preferred_element_type=f32)
                       + b1_ref[...])
        h0_scr[...] = h0n
        h1_scr[...] = h1n

        # --- MLP head: LReLU -> Linear(120,256) -> ... -> Linear(256,128) ---
        a = _leaky(h1n)
        a = _leaky(jnp.dot(a, w1_ref[...], preferred_element_type=f32) + bw1_ref[...])
        a = _leaky(jnp.dot(a, w2_ref[...], preferred_element_type=f32) + bw2_ref[...])
        a = _leaky(jnp.dot(a, w3_ref[...], preferred_element_type=f32) + bw3_ref[...])
        y_ref[t] = jnp.dot(a, w4_ref[...], preferred_element_type=f32) + bw4_ref[...]

    hn_ref[0] = h0_scr[...]
    hn_ref[1] = h1_scr[...]


def init_params(key):
    """Synthetic PyTorch-style params in 'true' shapes ((in, out) transposed)."""
    ks = jax.random.split(key, 14)

    def u(k, shape, fan_in):
        bound = 1.0 / (fan_in ** 0.5)
        return jax.random.uniform(k, shape, jnp.float32, -bound, bound)

    in_size = Z_SHAPE + ACTION_SIZE
    h = OUTPUT_SHAPE
    p = {}
    # RNN layer 0 (weights stored transposed: (in, out)); bias = b_ih + b_hh combined
    p['wih0'] = u(ks[0], (in_size, h), h)
    p['whh0'] = u(ks[1], (h, h), h)
    p['b0'] = u(ks[2], (h,), h)
    # RNN layer 1
    p['wih1'] = u(ks[3], (h, h), h)
    p['whh1'] = u(ks[4], (h, h), h)
    p['b1'] = u(ks[5], (h,), h)
    # MLP: 120 -> 256 -> 512 -> 256 -> 128
    p['w1'] = u(ks[6], (h, 256), h);       p['bw1'] = u(ks[7], (256,), h)
    p['w2'] = u(ks[8], (256, 512), 256);   p['bw2'] = u(ks[9], (512,), 256)
    p['w3'] = u(ks[10], (512, 256), 512);  p['bw3'] = u(ks[11], (256,), 512)
    p['w4'] = u(ks[12], (256, Z_SHAPE), 256); p['bw4'] = u(ks[13], (Z_SHAPE,), 256)
    return p


def pack_params(p):
    """One-time repack of true-shaped params into lane-dense kernel operands."""
    H, HP = OUTPUT_SHAPE, H_PAD

    def padrc(w, rows, cols):
        return jnp.pad(w, ((0, rows - w.shape[0]), (0, cols - w.shape[1])))

    kp = {}
    kp['wz0'] = padrc(p['wih0'][:Z_SHAPE], Z_SHAPE, HP)         # (128, 128)
    kp['wa0'] = padrc(p['wih0'][Z_SHAPE:], ACTION_SIZE, HP)     # (A, 128)
    kp['uh0'] = padrc(p['whh0'], HP, HP)                        # (128, 128)
    kp['b0'] = jnp.pad(p['b0'], (0, HP - H))[None, :]           # (1, 128)
    kp['wz1'] = padrc(p['wih1'], HP, HP)
    kp['uh1'] = padrc(p['whh1'], HP, HP)
    kp['b1'] = jnp.pad(p['b1'], (0, HP - H))[None, :]
    kp['w1'] = padrc(p['w1'], HP, 256);  kp['bw1'] = p['bw1'][None, :]
    kp['w2'] = p['w2'];                  kp['bw2'] = p['bw2'][None, :]
    kp['w3'] = p['w3'];                  kp['bw3'] = p['bw3'][None, :]
    kp['w4'] = p['w4'];                  kp['bw4'] = p['bw4'][None, :]
    return kp


@jax.jit
def rnn_forward(previous_state, action, hidden, kp):
    """previous_state: (T, B, Z), action: (T, B, A), hidden: (2, B, 120)."""
    assert previous_state.ndim == 3, f"Shape {previous_state.shape}"
    assert action.ndim == 3, f"Shape {action.shape}"
    assert hidden.ndim == 3, f"Shape {hidden.shape}"
    T, B, _ = previous_state.shape

    # Pad the initial hidden state to the lane-dense 128-wide layout.
    h_in = jnp.pad(hidden, ((0, 0), (0, 0), (0, H_PAD - OUTPUT_SHAPE)))

    args = (previous_state, action, h_in,
            kp['wz0'], kp['wa0'], kp['uh0'], kp['b0'],
            kp['wz1'], kp['uh1'], kp['b1'],
            kp['w1'], kp['bw1'], kp['w2'], kp['bw2'],
            kp['w3'], kp['bw3'], kp['w4'], kp['bw4'])

    # Cost estimate: 8 matmuls per (timestep, batch row), 2 tanh layers.
    kn_sum = 4 * 128 * 128 + 128 * 256 + 256 * 512 + 512 * 256 + 256 * 128
    flops = 2 * T * B * kn_sum
    transcendentals = T * B * 2 * H_PAD
    bytes_accessed = (sum(int(a.size) * a.dtype.itemsize for a in args)
                      + (T * B * Z_SHAPE + 2 * B * H_PAD) * 4)

    vmem = pl.BlockSpec(memory_space=pltpu.MemorySpace.VMEM)
    y, hn = pl.pallas_call(
        rnn_mlp_kernel,
        out_shape=(
            jax.ShapeDtypeStruct((T, B, Z_SHAPE), jnp.float32),
            jax.ShapeDtypeStruct((NUM_RNN_LAYERS, B, H_PAD), jnp.float32),
        ),
        in_specs=[vmem] * len(args),
        out_specs=(vmem, vmem),
        scratch_shapes=[pltpu.VMEM((B, H_PAD), jnp.float32),
                        pltpu.VMEM((B, H_PAD), jnp.float32)],
        cost_estimate=pl.CostEstimate(flops=flops,
                                      transcendentals=transcendentals,
                                      bytes_accessed=bytes_accessed),
    )(*args)

    hn = hn[:, :, :OUTPUT_SHAPE]          # back to the module's (2, B, 120)
    y = y[0] if T == 1 else y             # mirrors PyTorch's x.squeeze(0)
    return y, hn


def ref_forward(previous_state, action, hidden, params):
    """Pure-JAX reference of the PyTorch semantics (for correctness check)."""
    x = jnp.concatenate([previous_state, action], axis=-1)   # (T, B, Z+A)
    h0, h1 = hidden[0], hidden[1]
    ys = []
    for t in range(x.shape[0]):
        h0 = jnp.tanh(x[t] @ params['wih0'] + h0 @ params['whh0'] + params['b0'])
        h1 = jnp.tanh(h0 @ params['wih1'] + h1 @ params['whh1'] + params['b1'])
        a = _leaky(h1)
        a = _leaky(a @ params['w1'] + params['bw1'])
        a = _leaky(a @ params['w2'] + params['bw2'])
        a = _leaky(a @ params['w3'] + params['bw3'])
        ys.append(a @ params['w4'] + params['bw4'])
    y = jnp.stack(ys, axis=0)
    y = y[0] if x.shape[0] == 1 else y
    return y, jnp.stack([h0, h1], axis=0)


if __name__ == "__main__":
    key = jax.random.PRNGKey(0)
    kpk, k1, k2, k3 = jax.random.split(key, 4)
    params = init_params(kpk)
    kparams = pack_params(params)   # one-time repack (lane-dense, split action col)

    T, B = 8, 2
    previous_state = jax.random.normal(k1, (T, B, Z_SHAPE), jnp.float32)
    action = jax.random.normal(k2, (T, B, ACTION_SIZE), jnp.float32)
    hidden = jax.random.normal(k3, (NUM_RNN_LAYERS, B, OUTPUT_SHAPE), jnp.float32)

    # Multi-timestep path (weights loaded once for all T steps).
    y, hn = rnn_forward(previous_state, action, hidden, kparams)
    jax.block_until_ready((y, hn))
    y_ref, hn_ref = ref_forward(previous_state, action, hidden, params)
    assert y.shape == (T, B, Z_SHAPE)
    assert hn.shape == (NUM_RNN_LAYERS, B, OUTPUT_SHAPE)
    assert jnp.allclose(y, y_ref, atol=1e-4, rtol=1e-4)
    assert jnp.allclose(hn, hn_ref, atol=1e-4, rtol=1e-4)

    # Single-step path the original module is typically used with (T == 1).
    y1, hn1 = rnn_forward(previous_state[:1], action[:1], hidden, kparams)
    jax.block_until_ready((y1, hn1))
    y1_ref, hn1_ref = ref_forward(previous_state[:1], action[:1], hidden, params)
    assert y1.shape == (B, Z_SHAPE)
    assert hn1.shape == (NUM_RNN_LAYERS, B, OUTPUT_SHAPE)
    assert jnp.allclose(y1, y1_ref, atol=1e-4, rtol=1e-4)
    assert jnp.allclose(hn1, hn1_ref, atol=1e-4, rtol=1e-4)

    print("KERNEL_OK")
</pallas_src>

<mosaic_0001>
module attributes {stable_mosaic.version = 11 : i64} {
  func.func @rnn_mlp_kernel(%arg0: memref<8x2x128xf32, #tpu.memory_space<vmem>>, %arg1: memref<8x2x1xf32, #tpu.memory_space<vmem>>, %arg2: memref<2x2x128xf32, #tpu.memory_space<vmem>>, %arg3: memref<128x128xf32, #tpu.memory_space<vmem>>, %arg4: memref<1x128xf32, #tpu.memory_space<vmem>>, %arg5: memref<128x128xf32, #tpu.memory_space<vmem>>, %arg6: memref<1x128xf32, #tpu.memory_space<vmem>>, %arg7: memref<128x128xf32, #tpu.memory_space<vmem>>, %arg8: memref<128x128xf32, #tpu.memory_space<vmem>>, %arg9: memref<1x128xf32, #tpu.memory_space<vmem>>, %arg10: memref<128x256xf32, #tpu.memory_space<vmem>>, %arg11: memref<1x256xf32, #tpu.memory_space<vmem>>, %arg12: memref<256x512xf32, #tpu.memory_space<vmem>>, %arg13: memref<1x512xf32, #tpu.memory_space<vmem>>, %arg14: memref<512x256xf32, #tpu.memory_space<vmem>>, %arg15: memref<1x256xf32, #tpu.memory_space<vmem>>, %arg16: memref<256x128xf32, #tpu.memory_space<vmem>>, %arg17: memref<1x128xf32, #tpu.memory_space<vmem>>, %arg18: memref<8x2x128xf32, #tpu.memory_space<vmem>>, %arg19: memref<2x2x128xf32, #tpu.memory_space<vmem>>, %arg20: memref<2x128xf32, #tpu.memory_space<vmem>>, %arg21: memref<2x128xf32, #tpu.memory_space<vmem>>) attributes {dimension_semantics = [], scalar_prefetch = 0 : i64, scratch_operands = 2 : i64, tpu.core_type = #tpu.core_type<tc>} {
    %c0 = arith.constant 0 : index
    %c0_0 = arith.constant 0 : index
    %c0_1 = arith.constant 0 : index
    %0 = vector.load %arg2[%c0, %c0_0, %c0_1] : memref<2x2x128xf32, #tpu.memory_space<vmem>>, vector<1x2x128xf32>
    %1 = vector.shape_cast %0 : vector<1x2x128xf32> to vector<2x128xf32>
    %c0_2 = arith.constant 0 : index
    %c0_3 = arith.constant 0 : index
    %2 = vector.load %arg20[%c0_2, %c0_3] : memref<2x128xf32, #tpu.memory_space<vmem>>, vector<2x128xf32>
    tpu.vector_store %arg20[%c0_2, %c0_3], %1 {strides = array<i32>} : memref<2x128xf32, #tpu.memory_space<vmem>>, vector<2x128xf32>,
    %c1 = arith.constant 1 : index
    %c0_4 = arith.constant 0 : index
    %c0_5 = arith.constant 0 : index
    %3 = vector.load %arg2[%c1, %c0_4, %c0_5] : memref<2x2x128xf32, #tpu.memory_space<vmem>>, vector<1x2x128xf32>
    %4 = vector.shape_cast %3 : vector<1x2x128xf32> to vector<2x128xf32>
    %c0_6 = arith.constant 0 : index
    %c0_7 = arith.constant 0 : index
    %5 = vector.load %arg21[%c0_6, %c0_7] : memref<2x128xf32, #tpu.memory_space<vmem>>, vector<2x128xf32>
    tpu.vector_store %arg21[%c0_6, %c0_7], %4 {strides = array<i32>} : memref<2x128xf32, #tpu.memory_space<vmem>>, vector<2x128xf32>,
    %c0_i32 = arith.constant 0 : i32
    %c8_i32 = arith.constant 8 : i32
    %6 = arith.addi %c0_i32, %c8_i32 : i32
    %c1_i32 = arith.constant 1 : i32
    scf.for %arg22 = %c0_i32 to %6 step %c1_i32  : i32 {
      %c1_i32_19 = arith.constant 1 : i32
      %15 = arith.muli %arg22, %c1_i32_19 : i32
      %c0_i32_20 = arith.constant 0 : i32
      %16 = arith.addi %c0_i32_20, %15 : i32
      %17 = arith.index_cast %16 : i32 to index
      %c0_21 = arith.constant 0 : index
      %c0_22 = arith.constant 0 : index
      %18 = vector.load %arg0[%17, %c0_21, %c0_22] : memref<8x2x128xf32, #tpu.memory_space<vmem>>, vector<1x2x128xf32>
      %19 = vector.shape_cast %18 : vector<1x2x128xf32> to vector<2x128xf32>
      %20 = arith.index_cast %16 : i32 to index
      %c0_23 = arith.constant 0 : index
      %c0_24 = arith.constant 0 : index
      %21 = vector.load %arg1[%20, %c0_23, %c0_24] : memref<8x2x1xf32, #tpu.memory_space<vmem>>, vector<1x2x1xf32>
      %22 = vector.shape_cast %21 : vector<1x2x1xf32> to vector<2x1xf32>
      %c0_25 = arith.constant 0 : index
      %c0_26 = arith.constant 0 : index
      %23 = vector.load %arg20[%c0_25, %c0_26] : memref<2x128xf32, #tpu.memory_space<vmem>>, vector<2x128xf32>
      %c0_27 = arith.constant 0 : index
      %c0_28 = arith.constant 0 : index
      %24 = vector.load %arg21[%c0_27, %c0_28] : memref<2x128xf32, #tpu.memory_space<vmem>>, vector<2x128xf32>
      %c0_29 = arith.constant 0 : index
      %c0_30 = arith.constant 0 : index
      %25 = vector.load %arg4[%c0_29, %c0_30] : memref<1x128xf32, #tpu.memory_space<vmem>>, vector<1x128xf32>
      %26 = vector.broadcast %22 : vector<2x1xf32> to vector<2x128xf32>
      %27 = vector.broadcast %25 : vector<1x128xf32> to vector<2x128xf32>
      %28 = arith.mulf %26, %27 : vector<2x128xf32>
      %c0_31 = arith.constant 0 : index
      %c0_32 = arith.constant 0 : index
      %29 = vector.load %arg3[%c0_31, %c0_32] : memref<128x128xf32, #tpu.memory_space<vmem>>, vector<128x128xf32>
      %cst = arith.constant dense<0.000000e+00> : vector<2x128xf32>
      %30 = tpu.matmul %19, %29, %cst {dimension_numbers = #tpu.dot_dimension_numbers<[1], [0], [0], [1], [0, 0, 1, 1], [], []>} : vector<2x128xf32>, vector<128x128xf32>, vector<2x128xf32> -> vector<2x128xf32>
      %31 = arith.addf %30, %28 : vector<2x128xf32>
      %c0_33 = arith.constant 0 : index
      %c0_34 = arith.constant 0 : index
      %32 = vector.load %arg5[%c0_33, %c0_34] : memref<128x128xf32, #tpu.memory_space<vmem>>, vector<128x128xf32>
      %cst_35 = arith.constant dense<0.000000e+00> : vector<2x128xf32>
      %33 = tpu.matmul %23, %32, %cst_35 {dimension_numbers = #tpu.dot_dimension_numbers<[1], [0], [0], [1], [0, 0, 1, 1], [], []>} : vector<2x128xf32>, vector<128x128xf32>, vector<2x128xf32> -> vector<2x128xf32>
      %34 = arith.addf %31, %33 : vector<2x128xf32>
      %c0_36 = arith.constant 0 : index
      %c0_37 = arith.constant 0 : index
      %35 = vector.load %arg6[%c0_36, %c0_37] : memref<1x128xf32, #tpu.memory_space<vmem>>, vector<1x128xf32>
      %36 = vector.broadcast %35 : vector<1x128xf32> to vector<2x128xf32>
      %37 = arith.addf %34, %36 : vector<2x128xf32>
      %38 = math.tanh %37 : vector<2x128xf32>
      %c0_38 = arith.constant 0 : index
      %c0_39 = arith.constant 0 : index
      %39 = vector.load %arg7[%c0_38, %c0_39] : memref<128x128xf32, #tpu.memory_space<vmem>>, vector<128x128xf32>
      %cst_40 = arith.constant dense<0.000000e+00> : vector<2x128xf32>
      %40 = tpu.matmul %38, %39, %cst_40 {dimension_numbers = #tpu.dot_dimension_numbers<[1], [0], [0], [1], [0, 0, 1, 1], [], []>} : vector<2x128xf32>, vector<128x128xf32>, vector<2x128xf32> -> vector<2x128xf32>
      %c0_41 = arith.constant 0 : index
      %c0_42 = arith.constant 0 : index
      %41 = vector.load %arg8[%c0_41, %c0_42] : memref<128x128xf32, #tpu.memory_space<vmem>>, vector<128x128xf32>
      %cst_43 = arith.constant dense<0.000000e+00> : vector<2x128xf32>
      %42 = tpu.matmul %24, %41, %cst_43 {dimension_numbers = #tpu.dot_dimension_numbers<[1], [0], [0], [1], [0, 0, 1, 1], [], []>} : vector<2x128xf32>, vector<128x128xf32>, vector<2x128xf32> -> vector<2x128xf32>
      %43 = arith.addf %40, %42 : vector<2x128xf32>
      %c0_44 = arith.constant 0 : index
      %c0_45 = arith.constant 0 : index
      %44 = vector.load %arg9[%c0_44, %c0_45] : memref<1x128xf32, #tpu.memory_space<vmem>>, vector<1x128xf32>
      %45 = vector.broadcast %44 : vector<1x128xf32> to vector<2x128xf32>
      %46 = arith.addf %43, %45 : vector<2x128xf32>
      %47 = math.tanh %46 : vector<2x128xf32>
      %c0_46 = arith.constant 0 : index
      %c0_47 = arith.constant 0 : index
      %48 = vector.load %arg20[%c0_46, %c0_47] : memref<2x128xf32, #tpu.memory_space<vmem>>, vector<2x128xf32>
      tpu.vector_store %arg20[%c0_46, %c0_47], %38 {strides = array<i32>} : memref<2x128xf32, #tpu.memory_space<vmem>>, vector<2x128xf32>,
      %c0_48 = arith.constant 0 : index
      %c0_49 = arith.constant 0 : index
      %49 = vector.load %arg21[%c0_48, %c0_49] : memref<2x128xf32, #tpu.memory_space<vmem>>, vector<2x128xf32>
      tpu.vector_store %arg21[%c0_48, %c0_49], %47 {strides = array<i32>} : memref<2x128xf32, #tpu.memory_space<vmem>>, vector<2x128xf32>,
      %cst_50 = arith.constant 0.000000e+00 : f32
      %50 = vector.broadcast %cst_50 : f32 to vector<2x128xf32>
      %51 = arith.cmpf oge, %47, %50 : vector<2x128xf32>
      %cst_51 = arith.constant 0.00999999977 : f32
      %52 = vector.broadcast %cst_51 : f32 to vector<2x128xf32>
      %53 = arith.mulf %52, %47 : vector<2x128xf32>
      %54 = arith.select %51, %47, %53 : vector<2x128xi1>, vector<2x128xf32>
      %c0_52 = arith.constant 0 : index
      %c0_53 = arith.constant 0 : index
      %55 = vector.load %arg10[%c0_52, %c0_53] : memref<128x256xf32, #tpu.memory_space<vmem>>, vector<128x256xf32>
      %cst_54 = arith.constant dense<0.000000e+00> : vector<2x256xf32>
      %56 = tpu.matmul %54, %55, %cst_54 {dimension_numbers = #tpu.dot_dimension_numbers<[1], [0], [0], [1], [0, 0, 1, 1], [], []>} : vector<2x128xf32>, vector<128x256xf32>, vector<2x256xf32> -> vector<2x256xf32>
      %c0_55 = arith.constant 0 : index
      %c0_56 = arith.constant 0 : index
      %57 = vector.load %arg11[%c0_55, %c0_56] : memref<1x256xf32, #tpu.memory_space<vmem>>, vector<1x256xf32>
      %58 = vector.broadcast %57 : vector<1x256xf32> to vector<2x256xf32>
      %59 = arith.addf %56, %58 : vector<2x256xf32>
      %cst_57 = arith.constant 0.000000e+00 : f32
      %60 = vector.broadcast %cst_57 : f32 to vector<2x256xf32>
      %61 = arith.cmpf oge, %59, %60 : vector<2x256xf32>
      %cst_58 = arith.constant 0.00999999977 : f32
      %62 = vector.broadcast %cst_58 : f32 to vector<2x256xf32>
      %63 = arith.mulf %62, %59 : vector<2x256xf32>
      %64 = arith.select %61, %59, %63 : vector<2x256xi1>, vector<2x256xf32>
      %c0_59 = arith.constant 0 : index
      %c0_60 = arith.constant 0 : index
      %65 = vector.load %arg12[%c0_59, %c0_60] : memref<256x512xf32, #tpu.memory_space<vmem>>, vector<256x512xf32>
      %cst_61 = arith.constant dense<0.000000e+00> : vector<2x512xf32>
      %66 = tpu.matmul %64, %65, %cst_61 {dimension_numbers = #tpu.dot_dimension_numbers<[1], [0], [0], [1], [0, 0, 1, 1], [], []>} : vector<2x256xf32>, vector<256x512xf32>, vector<2x512xf32> -> vector<2x512xf32>
      %c0_62 = arith.constant 0 : index
      %c0_63 = arith.constant 0 : index
      %67 = vector.load %arg13[%c0_62, %c0_63] : memref<1x512xf32, #tpu.memory_space<vmem>>, vector<1x512xf32>
      %68 = vector.broadcast %67 : vector<1x512xf32> to vector<2x512xf32>
      %69 = arith.addf %66, %68 : vector<2x512xf32>
      %cst_64 = arith.constant 0.000000e+00 : f32
      %70 = vector.broadcast %cst_64 : f32 to vector<2x512xf32>
      %71 = arith.cmpf oge, %69, %70 : vector<2x512xf32>
      %cst_65 = arith.constant 0.00999999977 : f32
      %72 = vector.broadcast %cst_65 : f32 to vector<2x512xf32>
      %73 = arith.mulf %72, %69 : vector<2x512xf32>
      %74 = arith.select %71, %69, %73 : vector<2x512xi1>, vector<2x512xf32>
      %c0_66 = arith.constant 0 : index
      %c0_67 = arith.constant 0 : index
      %75 = vector.load %arg14[%c0_66, %c0_67] : memref<512x256xf32, #tpu.memory_space<vmem>>, vector<512x256xf32>
      %cst_68 = arith.constant dense<0.000000e+00> : vector<2x256xf32>
      %76 = tpu.matmul %74, %75, %cst_68 {dimension_numbers = #tpu.dot_dimension_numbers<[1], [0], [0], [1], [0, 0, 1, 1], [], []>} : vector<2x512xf32>, vector<512x256xf32>, vector<2x256xf32> -> vector<2x256xf32>
      %c0_69 = arith.constant 0 : index
      %c0_70 = arith.constant 0 : index
      %77 = vector.load %arg15[%c0_69, %c0_70] : memref<1x256xf32, #tpu.memory_space<vmem>>, vector<1x256xf32>
      %78 = vector.broadcast %77 : vector<1x256xf32> to vector<2x256xf32>
      %79 = arith.addf %76, %78 : vector<2x256xf32>
      %cst_71 = arith.constant 0.000000e+00 : f32
      %80 = vector.broadcast %cst_71 : f32 to vector<2x256xf32>
      %81 = arith.cmpf oge, %79, %80 : vector<2x256xf32>
      %cst_72 = arith.constant 0.00999999977 : f32
      %82 = vector.broadcast %cst_72 : f32 to vector<2x256xf32>
      %83 = arith.mulf %82, %79 : vector<2x256xf32>
      %84 = arith.select %81, %79, %83 : vector<2x256xi1>, vector<2x256xf32>
      %c0_73 = arith.constant 0 : index
      %c0_74 = arith.constant 0 : index
      %85 = vector.load %arg16[%c0_73, %c0_74] : memref<256x128xf32, #tpu.memory_space<vmem>>, vector<256x128xf32>
      %cst_75 = arith.constant dense<0.000000e+00> : vector<2x128xf32>
      %86 = tpu.matmul %84, %85, %cst_75 {dimension_numbers = #tpu.dot_dimension_numbers<[1], [0], [0], [1], [0, 0, 1, 1], [], []>} : vector<2x256xf32>, vector<256x128xf32>, vector<2x128xf32> -> vector<2x128xf32>
      %c0_76 = arith.constant 0 : index
      %c0_77 = arith.constant 0 : index
      %87 = vector.load %arg17[%c0_76, %c0_77] : memref<1x128xf32, #tpu.memory_space<vmem>>, vector<1x128xf32>
      %88 = vector.broadcast %87 : vector<1x128xf32> to vector<2x128xf32>
      %89 = arith.addf %86, %88 : vector<2x128xf32>
      %90 = arith.index_cast %16 : i32 to index
      %c0_78 = arith.constant 0 : index
      %c0_79 = arith.constant 0 : index
      %91 = vector.load %arg18[%90, %c0_78, %c0_79] : memref<8x2x128xf32, #tpu.memory_space<vmem>>, vector<1x2x128xf32>
      %92 = vector.shape_cast %91 : vector<1x2x128xf32> to vector<2x128xf32>
      %93 = vector.shape_cast %89 : vector<2x128xf32> to vector<1x2x128xf32>
      tpu.vector_store %arg18[%90, %c0_78, %c0_79], %93 {strides = array<i32>} : memref<8x2x128xf32, #tpu.memory_space<vmem>>, vector<1x2x128xf32>,
    }
    %c8_i32_8 = arith.constant 8 : i32
    %c0_9 = arith.constant 0 : index
    %c0_10 = arith.constant 0 : index
    %7 = vector.load %arg20[%c0_9, %c0_10] : memref<2x128xf32, #tpu.memory_space<vmem>>, vector<2x128xf32>
    %c0_11 = arith.constant 0 : index
    %c0_12 = arith.constant 0 : index
    %c0_13 = arith.constant 0 : index
    %8 = vector.load %arg19[%c0_11, %c0_12, %c0_13] : memref<2x2x128xf32, #tpu.memory_space<vmem>>, vector<1x2x128xf32>
    %9 = vector.shape_cast %8 : vector<1x2x128xf32> to vector<2x128xf32>
    %10 = vector.shape_cast %7 : vector<2x128xf32> to vector<1x2x128xf32>
    tpu.vector_store %arg19[%c0_11, %c0_12, %c0_13], %10 {strides = array<i32>} : memref<2x2x128xf32, #tpu.memory_space<vmem>>, vector<1x2x128xf32>,
    %c0_14 = arith.constant 0 : index
    %c0_15 = arith.constant 0 : index
    %11 = vector.load %arg21[%c0_14, %c0_15] : memref<2x128xf32, #tpu.memory_space<vmem>>, vector<2x128xf32>
    %c1_16 = arith.constant 1 : index
    %c0_17 = arith.constant 0 : index
    %c0_18 = arith.constant 0 : index
    %12 = vector.load %arg19[%c1_16, %c0_17, %c0_18] : memref<2x2x128xf32, #tpu.memory_space<vmem>>, vector<1x2x128xf32>
    %13 = vector.shape_cast %12 : vector<1x2x128xf32> to vector<2x128xf32>
    %14 = vector.shape_cast %11 : vector<2x128xf32> to vector<1x2x128xf32>
    tpu.vector_store %arg19[%c1_16, %c0_17, %c0_18], %14 {strides = array<i32>} : memref<2x2x128xf32, #tpu.memory_space<vmem>>, vector<1x2x128xf32>,
    return
  }
}

</mosaic_0001>

<llo_original>
// kernel: rnn_forward.1
$region0: #{rnn_forward.1}
  #allocation0 [shape = 'u32[]', space=smem, size = 0x4, offset = 0x4, fixed_abs, tag = 'smem constant byte address 0x4 - core index']
  #allocation1 [shape = 'u32[144,128]{1,0:T(1,128)}', space=vmem, size = 0x12000, scoped, tag = 'internal scratch']
  #allocation2 [shape = 'f32[2,128]{1,0:T(2,128)}', space=vmem, size = 0x400, scoped, tag = 'scratch operand']
  #allocation3 [shape = 'f32[2,128]{1,0:T(2,128)}', space=vmem, size = 0x400, scoped, tag = 'scratch operand']
  %s0 = inlined_call_operand.vmem [shape: f32[8,2,128], index: 0, kind: input, shape index: {}]
  %s1 = inlined_call_operand.vmem [shape: f32[8,2,1], index: 1, kind: input, shape index: {}]
  %s2 = inlined_call_operand.vmem [shape: f32[2,2,128], index: 2, kind: input, shape index: {}]
  %s3 = inlined_call_operand.hbm [shape: f32[128,128], index: 3, kind: input, shape index: {}]
  %s4 = inlined_call_operand.vmem [shape: f32[1,128], index: 4, kind: input, shape index: {}]
  %s5 = inlined_call_operand.hbm [shape: f32[128,128], index: 5, kind: input, shape index: {}]
  %s6 = inlined_call_operand.vmem [shape: f32[1,128], index: 6, kind: input, shape index: {}]
  %s7 = inlined_call_operand.hbm [shape: f32[128,128], index: 7, kind: input, shape index: {}]
  %s8 = inlined_call_operand.hbm [shape: f32[128,128], index: 8, kind: input, shape index: {}]
  %s9 = inlined_call_operand.vmem [shape: f32[1,128], index: 9, kind: input, shape index: {}]
  %s10 = inlined_call_operand.hbm [shape: f32[128,256], index: 10, kind: input, shape index: {}]
  %s11 = inlined_call_operand.vmem [shape: f32[1,256], index: 11, kind: input, shape index: {}]
  %s12 = inlined_call_operand.hbm [shape: f32[256,512], index: 12, kind: input, shape index: {}]
  %s13 = inlined_call_operand.vmem [shape: f32[1,512], index: 13, kind: input, shape index: {}]
  %s14 = inlined_call_operand.hbm [shape: f32[512,256], index: 14, kind: input, shape index: {}]
  %s15 = inlined_call_operand.vmem [shape: f32[1,256], index: 15, kind: input, shape index: {}]
  %s16 = inlined_call_operand.hbm [shape: f32[256,128], index: 16, kind: input, shape index: {}]
  %s17 = inlined_call_operand.vmem [shape: f32[1,128], index: 17, kind: input, shape index: {}]
  %s18 = inlined_call_operand.hbm [shape: f32[8,2,128], index: 18, kind: output, shape index: {0}]
  %s19 = inlined_call_operand.hbm [shape: f32[2,2,128], index: 19, kind: output, shape index: {1}]
  %20 = xla_tuple %s18, %s19
  %s21 = sld [smem:[#allocation0]]
  $region129: #{rnn_forward.1} parent=0
    _
  %s23 = ssub.s32 1, %s21
  %s24 = scalar_select 0, %s23, %s21
  $region1: #{rnn_forward.1} parent=0
    #allocation4 [shape = 'u8[65536]{0}', space=vmem, size = 0x10000, scoped, tag = 'input window, operand 3, single buffered']
    #allocation5 [shape = 's32[1]{0}', space=sflag, size = 0x4, scoped, tag = 'scoped memory for rnn_forward.1']
    #allocation6 [shape = 's32[1]{0}', space=sflag, size = 0x4, scoped, tag = 'scoped memory for rnn_forward.1']
    #allocation7 [shape = 'u8[65536]{0}', space=vmem, size = 0x10000, scoped, tag = 'input window, operand 5, single buffered']
    #allocation8 [shape = 's32[1]{0}', space=sflag, size = 0x4, scoped, tag = 'scoped memory for rnn_forward.1']
    #allocation9 [shape = 'u8[65536]{0}', space=vmem, size = 0x10000, scoped, tag = 'input window, operand 7, single buffered']
    #allocation10 [shape = 'u8[65536]{0}', space=vmem, size = 0x10000, scoped, tag = 'input window, operand 8, single buffered']
    #allocation11 [shape = 's32[1]{0}', space=sflag, size = 0x4, scoped, tag = 'scoped memory for rnn_forward.1']
    #allocation12 [shape = 'u8[131072]{0}', space=vmem, size = 0x20000, scoped, tag = 'input window, operand 10, single buffered']
    #allocation13 [shape = 'u8[524288]{0}', space=vmem, size = 0x80000, scoped, tag = 'input window, operand 12, single buffered']
    #allocation14 [shape = 's32[1]{0}', space=sflag, size = 0x4, scoped, tag = 'scoped memory for rnn_forward.1']
    #allocation15 [shape = 'u8[524288]{0}', space=vmem, size = 0x80000, scoped, tag = 'input window, operand 14, single buffered']
    #allocation16 [shape = 'u8[131072]{0}', space=vmem, size = 0x20000, scoped, tag = 'input window, operand 16, single buffered']
    #allocation17 [shape = 's32[1]{0}', space=sflag, size = 0x4, scoped, tag = 'scoped memory for rnn_forward.1']
    #allocation18 [shape = 'u8[8192]{0}', space=vmem, size = 0x2000, scoped, tag = 'output window, operand 0, single buffered']
    #allocation19 [shape = 'u8[2048]{0}', space=vmem, size = 0x800, scoped, tag = 'output window, operand 1, single buffered']
    #allocation20 [shape = 's32[1]{0}', space=sflag, size = 0x4, scoped, tag = 'scoped memory for rnn_forward.1']
    %25 = vsyncpa [#allocation5], 0
    %26 = vsyncpa [#allocation8], 0
    %27 = vsyncpa [#allocation11], 0
    %28 = vsyncpa [#allocation14], 0
    %29 = vsyncpa [#allocation17], 0
    %30 = vsyncpa [#allocation6], 0
    %31 = vsyncpa [#allocation20], 0
    // Predicated region
    $region2: #{rnn_forward.1} parent=1 // pred_check
      _
    $region3: #{rnn_forward.1} parent=1 // pred_check_branch
      %33 = sbr.rel (0) target = $region5
    $region4: #{rnn_forward.1} parent=1 // pred_region
      _
    $region5: #{rnn_forward.1} parent=1 // pred_fallthru
      _
    // Predicated region
    $region6: #{rnn_forward.1} parent=1 // pred_check
      _
    $region7: #{rnn_forward.1} parent=1 // pred_check_branch
      %35 = sbr.rel (0) target = $region9
    $region8: #{rnn_forward.1} parent=1 // pred_region
      _
    $region9: #{rnn_forward.1} parent=1 // pred_fallthru
      _
    // Predicated region
    $region10: #{rnn_forward.1} parent=1 // pred_check
      _
    $region11: #{rnn_forward.1} parent=1 // pred_check_branch
      %37 = sbr.rel (0) target = $region13
    $region12: #{rnn_forward.1} parent=1 // pred_region
      _
    $region13: #{rnn_forward.1} parent=1 // pred_fallthru
      _
    // Predicated region
    $region14: #{rnn_forward.1} parent=1 // pred_check
      _
    $region15: #{rnn_forward.1} parent=1 // pred_check_branch
      %39 = sbr.rel (0) target = $region17
    $region16: #{rnn_forward.1} parent=1 // pred_region
      %s41 = ssub.s32 2048, 2048
      %42 = vsyncadd [#allocation5], %s41
      %s43 = sshll.u32 [#allocation4], 4
      %s44 = int_to_ptr.vmem [resolvable:$true] %s43
      %49 = dma.hbm_to_vmem [thread:$0]  %s3, 2048, %s44, [#allocation5], 128, 128, 8
    $region17: #{rnn_forward.1} parent=1 // pred_fallthru
      _
    // Predicated region
    $region18: #{rnn_forward.1} parent=1 // pred_check
      _
    $region19: #{rnn_forward.1} parent=1 // pred_check_branch
      %51 = sbr.rel (0) target = $region21
    $region20: #{rnn_forward.1} parent=1 // pred_region
      _
    $region21: #{rnn_forward.1} parent=1 // pred_fallthru
      _
    // Predicated region
    $region22: #{rnn_forward.1} parent=1 // pred_check
      _
    $region23: #{rnn_forward.1} parent=1 // pred_check_branch
      %53 = sbr.rel (0) target = $region25
    $region24: #{rnn_forward.1} parent=1 // pred_region
      %s55 = ssub.s32 2048, 2048
      %56 = vsyncadd [#allocation8], %s55
      %s57 = sshll.u32 [#allocation7], 4
      %s58 = int_to_ptr.vmem [resolvable:$true] %s57
      %63 = dma.hbm_to_vmem [thread:$0]  %s5, 2048, %s58, [#allocation8], 128, 128, 8
    $region25: #{rnn_forward.1} parent=1 // pred_fallthru
      _
    // Predicated region
    $region26: #{rnn_forward.1} parent=1 // pred_check
      _
    $region27: #{rnn_forward.1} parent=1 // pred_check_branch
      %65 = sbr.rel (0) target = $region29
    $region28: #{rnn_forward.1} parent=1 // pred_region
      _
    $region29: #{rnn_forward.1} parent=1 // pred_fallthru
      _
    // Predicated region
    $region30: #{rnn_forward.1} parent=1 // pred_check
      _
    $region31: #{rnn_forward.1} parent=1 // pred_check_branch
      %67 = sbr.rel (0) target = $region33
    $region32: #{rnn_forward.1} parent=1 // pred_region
      %s69 = ssub.s32 2048, 2048
      %70 = vsyncadd [#allocation8], %s69
      %s71 = sshll.u32 [#allocation9], 4
      %s72 = int_to_ptr.vmem [resolvable:$true] %s71
      %77 = dma.hbm_to_vmem [thread:$0]  %s7, 2048, %s72, [#allocation8], 128, 128, 8
    $region33: #{rnn_forward.1} parent=1 // pred_fallthru
      _
    // Predicated region
    $region34: #{rnn_forward.1} parent=1 // pred_check
      _
    $region35: #{rnn_forward.1} parent=1 // pred_check_branch
      %79 = sbr.rel (0) target = $region37
    $region36: #{rnn_forward.1} parent=1 // pred_region
      %s81 = ssub.s32 2048, 2048
      %82 = vsyncadd [#allocation11], %s81
      %s83 = sshll.u32 [#allocation10], 4
      %s84 = int_to_ptr.vmem [resolvable:$true] %s83
      %89 = dma.hbm_to_vmem [thread:$0]  %s8, 2048, %s84, [#allocation11], 128, 128, 8
    $region37: #{rnn_forward.1} parent=1 // pred_fallthru
      _
    // Predicated region
    $region38: #{rnn_forward.1} parent=1 // pred_check
      _
    $region39: #{rnn_forward.1} parent=1 // pred_check_branch
      %91 = sbr.rel (0) target = $region41
    $region40: #{rnn_forward.1} parent=1 // pred_region
      _
    $region41: #{rnn_forward.1} parent=1 // pred_fallthru
      _
    // Predicated region
    $region42: #{rnn_forward.1} parent=1 // pred_check
      _
    $region43: #{rnn_forward.1} parent=1 // pred_check_branch
      %93 = sbr.rel (0) target = $region45
    $region44: #{rnn_forward.1} parent=1 // pred_region
      %s95 = ssub.s32 4096, 4096
      %96 = vsyncadd [#allocation11], %s95
      %s97 = sshll.u32 [#allocation12], 4
      %s98 = int_to_ptr.vmem [resolvable:$true] %s97
      %103 = dma.hbm_to_vmem [thread:$0]  %s10, 4096, %s98, [#allocation11], 256, 256, 16
    $region45: #{rnn_forward.1} parent=1 // pred_fallthru
      _
    // Predicated region
    $region46: #{rnn_forward.1} parent=1 // pred_check
      _
    $region47: #{rnn_forward.1} parent=1 // pred_check_branch
      %105 = sbr.rel (0) target = $region49
    $region48: #{rnn_forward.1} parent=1 // pred_region
      _
    $region49: #{rnn_forward.1} parent=1 // pred_fallthru
      _
    // Predicated region
    $region50: #{rnn_forward.1} parent=1 // pred_check
      _
    $region51: #{rnn_forward.1} parent=1 // pred_check_branch
      %107 = sbr.rel (0) target = $region53
    $region52: #{rnn_forward.1} parent=1 // pred_region
      %s109 = ssub.s32 16384, 16384
      %110 = vsyncadd [#allocation14], %s109
      %s111 = sshll.u32 [#allocation13], 4
      %s112 = int_to_ptr.vmem [resolvable:$true] %s111
      %117 = dma.hbm_to_vmem [thread:$0]  %s12, 16384, %s112, [#allocation14], 512, 512, 32
    $region53: #{rnn_forward.1} parent=1 // pred_fallthru
      _
    // Predicated region
    $region54: #{rnn_forward.1} parent=1 // pred_check
      _
    $region55: #{rnn_forward.1} parent=1 // pred_check_branch
      %119 = sbr.rel (0) target = $region57
    $region56: #{rnn_forward.1} parent=1 // pred_region
      _
    $region57: #{rnn_forward.1} parent=1 // pred_fallthru
      _
    // Predicated region
    $region58: #{rnn_forward.1} parent=1 // pred_check
      _
    $region59: #{rnn_forward.1} parent=1 // pred_check_branch
      %121 = sbr.rel (0) target = $region61
    $region60: #{rnn_forward.1} parent=1 // pred_region
      %s123 = ssub.s32 16384, 16384
      %124 = vsyncadd [#allocation14], %s123
      %s125 = sshll.u32 [#allocation15], 4
      %s126 = int_to_ptr.vmem [resolvable:$true] %s125
      %131 = dma.hbm_to_vmem [thread:$0]  %s14, 16384, %s126, [#allocation14], 256, 256, 16
    $region61: #{rnn_forward.1} parent=1 // pred_fallthru
      _
    // Predicated region
    $region62: #{rnn_forward.1} parent=1 // pred_check
      _
    $region63: #{rnn_forward.1} parent=1 // pred_check_branch
      %133 = sbr.rel (0) target = $region65
    $region64: #{rnn_forward.1} parent=1 // pred_region
      _
    $region65: #{rnn_forward.1} parent=1 // pred_fallthru
      _
    // Predicated region
    $region66: #{rnn_forward.1} parent=1 // pred_check
      _
    $region67: #{rnn_forward.1} parent=1 // pred_check_branch
      %135 = sbr.rel (0) target = $region69
    $region68: #{rnn_forward.1} parent=1 // pred_region
      %s137 = ssub.s32 4096, 4096
      %138 = vsyncadd [#allocation17], %s137
      %s139 = sshll.u32 [#allocation16], 4
      %s140 = int_to_ptr.vmem [resolvable:$true] %s139
      %145 = dma.hbm_to_vmem [thread:$0]  %s16, 4096, %s140, [#allocation17], 128, 128, 8
    $region69: #{rnn_forward.1} parent=1 // pred_fallthru
      _
    // Predicated region
    $region70: #{rnn_forward.1} parent=1 // pred_check
      _
    $region71: #{rnn_forward.1} parent=1 // pred_check_branch
      %147 = sbr.rel (0) target = $region73
    $region72: #{rnn_forward.1} parent=1 // pred_region
      _
    $region73: #{rnn_forward.1} parent=1 // pred_fallthru
      _
    // Predicated region
    $region74: #{rnn_forward.1} parent=1 // pred_check
      _
    $region75: #{rnn_forward.1} parent=1 // pred_check_branch
      %149 = sbr.rel (0) target = $region77
    $region76: #{rnn_forward.1} parent=1 // pred_region
      %150 = dma.done [#allocation5], 2048
    $region77: #{rnn_forward.1} parent=1 // pred_fallthru
      _
    // Predicated region
    $region78: #{rnn_forward.1} parent=1 // pred_check
      _
    $region79: #{rnn_forward.1} parent=1 // pred_check_branch
      %152 = sbr.rel (0) target = $region81
    $region80: #{rnn_forward.1} parent=1 // pred_region
      %153 = dma.done [#allocation8], 2048
    $region81: #{rnn_forward.1} parent=1 // pred_fallthru
      _
    // Predicated region
    $region82: #{rnn_forward.1} parent=1 // pred_check
      _
    $region83: #{rnn_forward.1} parent=1 // pred_check_branch
      %155 = sbr.rel (0) target = $region85
    $region84: #{rnn_forward.1} parent=1 // pred_region
      %156 = dma.done [#allocation8], 2048
    $region85: #{rnn_forward.1} parent=1 // pred_fallthru
      _
    // Predicated region
    $region86: #{rnn_forward.1} parent=1 // pred_check
      _
    $region87: #{rnn_forward.1} parent=1 // pred_check_branch
      %158 = sbr.rel (0) target = $region89
    $region88: #{rnn_forward.1} parent=1 // pred_region
      %159 = dma.done [#allocation11], 2048
    $region89: #{rnn_forward.1} parent=1 // pred_fallthru
      _
    // Predicated region
    $region90: #{rnn_forward.1} parent=1 // pred_check
      _
    $region91: #{rnn_forward.1} parent=1 // pred_check_branch
      %161 = sbr.rel (0) target = $region93
    $region92: #{rnn_forward.1} parent=1 // pred_region
      %162 = dma.done [#allocation11], 4096
    $region93: #{rnn_forward.1} parent=1 // pred_fallthru
      _
    // Predicated region
    $region94: #{rnn_forward.1} parent=1 // pred_check
      _
    $region95: #{rnn_forward.1} parent=1 // pred_check_branch
      %164 = sbr.rel (0) target = $region97
    $region96: #{rnn_forward.1} parent=1 // pred_region
      %165 = dma.done [#allocation14], 16384
    $region97: #{rnn_forward.1} parent=1 // pred_fallthru
      _
    // Predicated region
    $region98: #{rnn_forward.1} parent=1 // pred_check
      _
    $region99: #{rnn_forward.1} parent=1 // pred_check_branch
      %167 = sbr.rel (0) target = $region101
    $region100: #{rnn_forward.1} parent=1 // pred_region
      %168 = dma.done [#allocation14], 16384
    $region101: #{rnn_forward.1} parent=1 // pred_fallthru
      _
    // Predicated region
    $region102: #{rnn_forward.1} parent=1 // pred_check
      _
    $region103: #{rnn_forward.1} parent=1 // pred_check_branch
      %170 = sbr.rel (0) target = $region105
    $region104: #{rnn_forward.1} parent=1 // pred_region
      %171 = dma.done [#allocation17], 4096
    $region105: #{rnn_forward.1} parent=1 // pred_fallthru
      _
    %v172 = vld [vmem:[%s2] sm:$0x3]
    %173 = vst [vmem:[#allocation2] sm:$0x3] %v172
    %s174 = scalar_lea.vmem %s2, 2
    %v175 = vld [vmem:[%s174] sm:$0x3]
    %176 = vst [vmem:[#allocation3] sm:$0x3] %v175
    loop: start=0, step=1, limit=8
    $region106: #{rnn_forward.1} parent=1 // loop_pre_header
      _
    $region107: #{rnn_forward.1} parent=1 // loop_header
      %s178 = sphi 0, %s182
      %p179 = scmp.ge.s32.totalorder %s178, 8
    $region108: #{rnn_forward.1} parent=1 // loop_header_branch
      %181 = sbr.rel (%p179) target = $region112
    $region109: #{rnn_forward.1} parent=1 // loop_body
      %s183 = smul.u32 %s178, 2
      %s184 = scalar_lea.vmem %s0, %s183
      %v185 = vld [vmem:[%s184] sm:$0x3]
      %s186 = scalar_lea.vmem %s1, %s183
      %v187 = vld [vmem:[%s186] sm:$0x3]
      %v188 = vld [vmem:[#allocation2] sm:$0x3]
      %v189 = vld [vmem:[#allocation3] sm:$0x3]
      %v190 = vld [vmem:[%s4] sm:$0x1]
      %192 = vset.pattern.permute.xlu0 0
      %193 = vperm.xlu0 %192, %v187
      %v194 = vpop.permute.xlu0 %193
      %v197 = vlaneseq
      %v198 = vshrl.u32 %v197, 7
      %v199 = vsub.s32 0, %v198
      %v200 = vrot.slane %v190, %v199
      %v202 = vmul.f32 %v194, %v200
      %v203 = vld [vmem:[#allocation4] sm:$0xff]
      %v204 = vld [vmem:[#allocation4 + $0x8] sm:$0xff]
      %v205 = vld [vmem:[#allocation4 + $0x10] sm:$0xff]
      %v206 = vld [vmem:[#allocation4 + $0x18] sm:$0xff]
      %v207 = vld [vmem:[#allocation4 + $0x20] sm:$0xff]
      %v208 = vld [vmem:[#allocation4 + $0x28] sm:$0xff]
      %v209 = vld [vmem:[#allocation4 + $0x30] sm:$0xff]
      %v210 = vld [vmem:[#allocation4 + $0x38] sm:$0xff]
      %v211 = vld [vmem:[#allocation4 + $0x40] sm:$0xff]
      %v212 = vld [vmem:[#allocation4 + $0x48] sm:$0xff]
      %v213 = vld [vmem:[#allocation4 + $0x50] sm:$0xff]
      %v214 = vld [vmem:[#allocation4 + $0x58] sm:$0xff]
      %v215 = vld [vmem:[#allocation4 + $0x60] sm:$0xff]
      %v216 = vld [vmem:[#allocation4 + $0x68] sm:$0xff]
      %v217 = vld [vmem:[#allocation4 + $0x70] sm:$0xff]
      %v218 = vld [vmem:[#allocation4 + $0x78] sm:$0xff]
      %219 = vmatprep.subr.mxu0 0.0
      %220 = vmatpush1.msra.mxu0 %v218
      %221 = vmatprep.subr.mxu0 0.0
      %222 = vmatpush1.msra.mxu0 %v217
      %223 = vmatprep.subr.mxu0 0.0
      %224 = vmatpush1.msra.mxu0 %v216
      %225 = vmatprep.subr.mxu0 0.0
      %226 = vmatpush1.msra.mxu0 %v215
      %227 = vmatprep.subr.mxu0 0.0
      %228 = vmatpush1.msra.mxu0 %v214
      %229 = vmatprep.subr.mxu0 0.0
      %230 = vmatpush1.msra.mxu0 %v213
      %231 = vmatprep.subr.mxu0 0.0
      %232 = vmatpush1.msra.mxu0 %v212
      %233 = vmatprep.subr.mxu0 0.0
      %234 = vmatpush1.msra.mxu0 %v211
      %235 = vmatprep.subr.mxu0 0.0
      %236 = vmatpush1.msra.mxu0 %v210
      %237 = vmatprep.subr.mxu0 0.0
      %238 = vmatpush1.msra.mxu0 %v209
      %239 = vmatprep.subr.mxu0 0.0
      %240 = vmatpush1.msra.mxu0 %v208
      %241 = vmatprep.subr.mxu0 0.0
      %242 = vmatpush1.msra.mxu0 %v207
      %243 = vmatprep.subr.mxu0 0.0
      %244 = vmatpush1.msra.mxu0 %v206
      %245 = vmatprep.subr.mxu0 0.0
      %246 = vmatpush1.msra.mxu0 %v205
      %247 = vmatprep.subr.mxu0 0.0
      %248 = vmatpush1.msra.mxu0 %v204
      %249 = vmatprep.subr.mxu0 0.0
      %250 = vmatpush1.msra.mxu0 %v203
      %251 = vmatprep.subr.mxu0 0.0
      %252 = vmatpush2.msra.mxu0 0.0
      %253 = vmatprep.subr.mxu0 0.0
      %254 = vmatpush2.msra.mxu0 0.0
      %255 = vmatprep.subr.mxu0 0.0
      %256 = vmatpush2.msra.mxu0 0.0
      %257 = vmatprep.subr.mxu0 0.0
      %258 = vmatpush2.msra.mxu0 0.0
      %259 = vmatprep.subr.mxu0 0.0
      %260 = vmatpush2.msra.mxu0 0.0
      %261 = vmatprep.subr.mxu0 0.0
      %262 = vmatpush2.msra.mxu0 0.0
      %263 = vmatprep.subr.mxu0 0.0
      %264 = vmatpush2.msra.mxu0 0.0
      %265 = vmatprep.subr.mxu0 0.0
      %266 = vmatpush2.msra.mxu0 0.0
      %267 = vmatprep.subr.mxu0 0.0
      %268 = vmatpush2.msra.mxu0 0.0
      %269 = vmatprep.subr.mxu0 0.0
      %270 = vmatpush2.msra.mxu0 0.0
      %271 = vmatprep.subr.mxu0 0.0
      %272 = vmatpush2.msra.mxu0 0.0
      %273 = vmatprep.subr.mxu0 0.0
      %274 = vmatpush2.msra.mxu0 0.0
      %275 = vmatprep.subr.mxu0 0.0
      %276 = vmatpush2.msra.mxu0 0.0
      %277 = vmatprep.subr.mxu0 0.0
      %278 = vmatpush2.msra.mxu0 0.0
      %279 = vmatprep.subr.mxu0 0.0
      %280 = vmatpush2.msra.mxu0 0.0
      %281 = vmatprep.subr.mxu0 0.0
      %282 = vmatpush2.msra.mxu0 0.0
      %283 = vmatprep.mubr.f32.mxu0 0.0
      %284 = vmatmul.mubr.f32.gmra.mxu0 %v185
      %v285 = vpop.f32.mrf.mxu0
      %v286 = vadd.f32 %v202, %v285
      %v287 = vpop.f32.mrf.mxu0
      %288 = vdwg.mxu0
      %v289 = vld [vmem:[#allocation7] sm:$0xff]
      %v290 = vld [vmem:[#allocation7 + $0x8] sm:$0xff]
      %v291 = vld [vmem:[#allocation7 + $0x10] sm:$0xff]
      %v292 = vld [vmem:[#allocation7 + $0x18] sm:$0xff]
      %v293 = vld [vmem:[#allocation7 + $0x20] sm:$0xff]
      %v294 = vld [vmem:[#allocation7 + $0x28] sm:$0xff]
      %v295 = vld [vmem:[#allocation7 + $0x30] sm:$0xff]
      %v296 = vld [vmem:[#allocation7 + $0x38] sm:$0xff]
      %v297 = vld [vmem:[#allocation7 + $0x40] sm:$0xff]
      %v298 = vld [vmem:[#allocation7 + $0x48] sm:$0xff]
      %v299 = vld [vmem:[#allocation7 + $0x50] sm:$0xff]
      %v300 = vld [vmem:[#allocation7 + $0x58] sm:$0xff]
      %v301 = vld [vmem:[#allocation7 + $0x60] sm:$0xff]
      %v302 = vld [vmem:[#allocation7 + $0x68] sm:$0xff]
      %v303 = vld [vmem:[#allocation7 + $0x70] sm:$0xff]
      %v304 = vld [vmem:[#allocation7 + $0x78] sm:$0xff]
      %305 = vmatprep.subr.mxu0 0.0
      %306 = vmatpush1.msra.mxu0 %v304
      %307 = vmatprep.subr.mxu0 0.0
      %308 = vmatpush1.msra.mxu0 %v303
      %309 = vmatprep.subr.mxu0 0.0
      %310 = vmatpush1.msra.mxu0 %v302
      %311 = vmatprep.subr.mxu0 0.0
      %312 = vmatpush1.msra.mxu0 %v301
      %313 = vmatprep.subr.mxu0 0.0
      %314 = vmatpush1.msra.mxu0 %v300
      %315 = vmatprep.subr.mxu0 0.0
      %316 = vmatpush1.msra.mxu0 %v299
      %317 = vmatprep.subr.mxu0 0.0
      %318 = vmatpush1.msra.mxu0 %v298
      %319 = vmatprep.subr.mxu0 0.0
      %320 = vmatpush1.msra.mxu0 %v297
      %321 = vmatprep.subr.mxu0 0.0
      %322 = vmatpush1.msra.mxu0 %v296
      %323 = vmatprep.subr.mxu0 0.0
      %324 = vmatpush1.msra.mxu0 %v295
      %325 = vmatprep.subr.mxu0 0.0
      %326 = vmatpush1.msra.mxu0 %v294
      %327 = vmatprep.subr.mxu0 0.0
      %328 = vmatpush1.msra.mxu0 %v293
      %329 = vmatprep.subr.mxu0 0.0
      %330 = vmatpush1.msra.mxu0 %v292
      %331 = vmatprep.subr.mxu0 0.0
      %332 = vmatpush1.msra.mxu0 %v291
      %333 = vmatprep.subr.mxu0 0.0
      %334 = vmatpush1.msra.mxu0 %v290
      %335 = vmatprep.subr.mxu0 0.0
      %336 = vmatpush1.msra.mxu0 %v289
      %337 = vmatprep.subr.mxu0 0.0
      %338 = vmatpush2.msra.mxu0 0.0
      %339 = vmatprep.subr.mxu0 0.0
      %340 = vmatpush2.msra.mxu0 0.0
      %341 = vmatprep.subr.mxu0 0.0
      %342 = vmatpush2.msra.mxu0 0.0
      %343 = vmatprep.subr.mxu0 0.0
      %344 = vmatpush2.msra.mxu0 0.0
      %345 = vmatprep.subr.mxu0 0.0
      %346 = vmatpush2.msra.mxu0 0.0
      %347 = vmatprep.subr.mxu0 0.0
      %348 = vmatpush2.msra.mxu0 0.0
      %349 = vmatprep.subr.mxu0 0.0
      %350 = vmatpush2.msra.mxu0 0.0
      %351 = vmatprep.subr.mxu0 0.0
      %352 = vmatpush2.msra.mxu0 0.0
      %353 = vmatprep.subr.mxu0 0.0
      %354 = vmatpush2.msra.mxu0 0.0
      %355 = vmatprep.subr.mxu0 0.0
      %356 = vmatpush2.msra.mxu0 0.0
      %357 = vmatprep.subr.mxu0 0.0
      %358 = vmatpush2.msra.mxu0 0.0
      %359 = vmatprep.subr.mxu0 0.0
      %360 = vmatpush2.msra.mxu0 0.0
      %361 = vmatprep.subr.mxu0 0.0
      %362 = vmatpush2.msra.mxu0 0.0
      %363 = vmatprep.subr.mxu0 0.0
      %364 = vmatpush2.msra.mxu0 0.0
      %365 = vmatprep.subr.mxu0 0.0
      %366 = vmatpush2.msra.mxu0 0.0
      %367 = vmatprep.subr.mxu0 0.0
      %368 = vmatpush2.msra.mxu0 0.0
      %369 = vmatprep.mubr.f32.mxu0 0.0
      %370 = vmatmul.mubr.f32.gmra.mxu0 %v188
      %v371 = vpop.f32.mrf.mxu0
      %v372 = vadd.f32 0.0, %v371
      %v373 = vpop.f32.mrf.mxu0
      %374 = vdwg.mxu0
      %v375 = vadd.f32 %v286, %v372
      %v376 = vld [vmem:[%s6] sm:$0x1]
      %v378 = vlaneseq
      %v379 = vshrl.u32 %v378, 7
      %v380 = vsub.s32 0, %v379
      %v381 = vrot.slane %v376, %v380
      %v383 = vadd.f32 %v375, %v381
      %v384 = vtanh.pop %v383
      %v385 = vld [vmem:[#allocation9] sm:$0xff]
      %v386 = vld [vmem:[#allocation9 + $0x8] sm:$0xff]
      %v387 = vld [vmem:[#allocation9 + $0x10] sm:$0xff]
      %v388 = vld [vmem:[#allocation9 + $0x18] sm:$0xff]
      %v389 = vld [vmem:[#allocation9 + $0x20] sm:$0xff]
      %v390 = vld [vmem:[#allocation9 + $0x28] sm:$0xff]
      %v391 = vld [vmem:[#allocation9 + $0x30] sm:$0xff]
      %v392 = vld [vmem:[#allocation9 + $0x38] sm:$0xff]
      %v393 = vld [vmem:[#allocation9 + $0x40] sm:$0xff]
      %v394 = vld [vmem:[#allocation9 + $0x48] sm:$0xff]
      %v395 = vld [vmem:[#allocation9 + $0x50] sm:$0xff]
      %v396 = vld [vmem:[#allocation9 + $0x58] sm:$0xff]
      %v397 = vld [vmem:[#allocation9 + $0x60] sm:$0xff]
      %v398 = vld [vmem:[#allocation9 + $0x68] sm:$0xff]
      %v399 = vld [vmem:[#allocation9 + $0x70] sm:$0xff]
      %v400 = vld [vmem:[#allocation9 + $0x78] sm:$0xff]
      %v401 = vld [vmem:[#allocation10] sm:$0xff]
      %v402 = vld [vmem:[#allocation10 + $0x8] sm:$0xff]
      %v403 = vld [vmem:[#allocation10 + $0x10] sm:$0xff]
      %v404 = vld [vmem:[#allocation10 + $0x18] sm:$0xff]
      %v405 = vld [vmem:[#allocation10 + $0x20] sm:$0xff]
      %v406 = vld [vmem:[#allocation10 + $0x28] sm:$0xff]
      %v407 = vld [vmem:[#allocation10 + $0x30] sm:$0xff]
      %v408 = vld [vmem:[#allocation10 + $0x38] sm:$0xff]
      %v409 = vld [vmem:[#allocation10 + $0x40] sm:$0xff]
      %v410 = vld [vmem:[#allocation10 + $0x48] sm:$0xff]
      %v411 = vld [vmem:[#allocation10 + $0x50] sm:$0xff]
      %v412 = vld [vmem:[#allocation10 + $0x58] sm:$0xff]
      %v413 = vld [vmem:[#allocation10 + $0x60] sm:$0xff]
      %v414 = vld [vmem:[#allocation10 + $0x68] sm:$0xff]
      %v415 = vld [vmem:[#allocation10 + $0x70] sm:$0xff]
      %v416 = vld [vmem:[#allocation10 + $0x78] sm:$0xff]
      %417 = vmatprep.subr.mxu0 0.0
      %418 = vmatpush1.msra.mxu0 %v416
      %419 = vmatprep.subr.mxu0 0.0
      %420 = vmatpush1.msra.mxu0 %v415
      %421 = vmatprep.subr.mxu0 0.0
      %422 = vmatpush1.msra.mxu0 %v414
      %423 = vmatprep.subr.mxu0 0.0
      %424 = vmatpush1.msra.mxu0 %v413
      %425 = vmatprep.subr.mxu0 0.0
      %426 = vmatpush1.msra.mxu0 %v412
      %427 = vmatprep.subr.mxu0 0.0
      %428 = vmatpush1.msra.mxu0 %v411
      %429 = vmatprep.subr.mxu0 0.0
      %430 = vmatpush1.msra.mxu0 %v410
      %431 = vmatprep.subr.mxu0 0.0
      %432 = vmatpush1.msra.mxu0 %v409
      %433 = vmatprep.subr.mxu0 0.0
      %434 = vmatpush1.msra.mxu0 %v408
      %435 = vmatprep.subr.mxu0 0.0
      %436 = vmatpush1.msra.mxu0 %v407
      %437 = vmatprep.subr.mxu0 0.0
      %438 = vmatpush1.msra.mxu0 %v406
      %439 = vmatprep.subr.mxu0 0.0
      %440 = vmatpush1.msra.mxu0 %v405
      %441 = vmatprep.subr.mxu0 0.0
      %442 = vmatpush1.msra.mxu0 %v404
      %443 = vmatprep.subr.mxu0 0.0
      %444 = vmatpush1.msra.mxu0 %v403
      %445 = vmatprep.subr.mxu0 0.0
      %446 = vmatpush1.msra.mxu0 %v402
      %447 = vmatprep.subr.mxu0 0.0
      %448 = vmatpush1.msra.mxu0 %v401
      %449 = vmatprep.subr.mxu0 0.0
      %450 = vmatpush2.msra.mxu0 0.0
      %451 = vmatprep.subr.mxu0 0.0
      %452 = vmatpush2.msra.mxu0 0.0
      %453 = vmatprep.subr.mxu0 0.0
      %454 = vmatpush2.msra.mxu0 0.0
      %455 = vmatprep.subr.mxu0 0.0
      %456 = vmatpush2.msra.mxu0 0.0
      %457 = vmatprep.subr.mxu0 0.0
      %458 = vmatpush2.msra.mxu0 0.0
      %459 = vmatprep.subr.mxu0 0.0
      %460 = vmatpush2.msra.mxu0 0.0
      %461 = vmatprep.subr.mxu0 0.0
      %462 = vmatpush2.msra.mxu0 0.0
      %463 = vmatprep.subr.mxu0 0.0
      %464 = vmatpush2.msra.mxu0 0.0
      %465 = vmatprep.subr.mxu0 0.0
      %466 = vmatpush2.msra.mxu0 0.0
      %467 = vmatprep.subr.mxu0 0.0
      %468 = vmatpush2.msra.mxu0 0.0
      %469 = vmatprep.subr.mxu0 0.0
      %470 = vmatpush2.msra.mxu0 0.0
      %471 = vmatprep.subr.mxu0 0.0
      %472 = vmatpush2.msra.mxu0 0.0
      %473 = vmatprep.subr.mxu0 0.0
      %474 = vmatpush2.msra.mxu0 0.0
      %475 = vmatprep.subr.mxu0 0.0
      %476 = vmatpush2.msra.mxu0 0.0
      %477 = vmatprep.subr.mxu0 0.0
      %478 = vmatpush2.msra.mxu0 0.0
      %479 = vmatprep.subr.mxu0 0.0
      %480 = vmatpush2.msra.mxu0 0.0
      %481 = vmatprep.mubr.f32.mxu0 0.0
      %482 = vmatmul.mubr.f32.gmra.mxu0 %v189
      %v483 = vpop.f32.mrf.mxu0
      %v484 = vadd.f32 0.0, %v483
      %v485 = vpop.f32.mrf.mxu0
      %486 = vdwg.mxu0
      %487 = vmatprep.subr.mxu0 0.0
      %488 = vmatpush1.msra.mxu0 %v400
      %489 = vmatprep.subr.mxu0 0.0
      %490 = vmatpush1.msra.mxu0 %v399
      %491 = vmatprep.subr.mxu0 0.0
      %492 = vmatpush1.msra.mxu0 %v398
      %493 = vmatprep.subr.mxu0 0.0
      %494 = vmatpush1.msra.mxu0 %v397
      %495 = vmatprep.subr.mxu0 0.0
      %496 = vmatpush1.msra.mxu0 %v396
      %497 = vmatprep.subr.mxu0 0.0
      %498 = vmatpush1.msra.mxu0 %v395
      %499 = vmatprep.subr.mxu0 0.0
      %500 = vmatpush1.msra.mxu0 %v394
      %501 = vmatprep.subr.mxu0 0.0
      %502 = vmatpush1.msra.mxu0 %v393
      %503 = vmatprep.subr.mxu0 0.0
      %504 = vmatpush1.msra.mxu0 %v392
      %505 = vmatprep.subr.mxu0 0.0
      %506 = vmatpush1.msra.mxu0 %v391
      %507 = vmatprep.subr.mxu0 0.0
      %508 = vmatpush1.msra.mxu0 %v390
      %509 = vmatprep.subr.mxu0 0.0
      %510 = vmatpush1.msra.mxu0 %v389
      %511 = vmatprep.subr.mxu0 0.0
      %512 = vmatpush1.msra.mxu0 %v388
      %513 = vmatprep.subr.mxu0 0.0
      %514 = vmatpush1.msra.mxu0 %v387
      %515 = vmatprep.subr.mxu0 0.0
      %516 = vmatpush1.msra.mxu0 %v386
      %517 = vmatprep.subr.mxu0 0.0
      %518 = vmatpush1.msra.mxu0 %v385
      %519 = vmatprep.subr.mxu0 0.0
      %520 = vmatpush2.msra.mxu0 0.0
      %521 = vmatprep.subr.mxu0 0.0
      %522 = vmatpush2.msra.mxu0 0.0
      %523 = vmatprep.subr.mxu0 0.0
      %524 = vmatpush2.msra.mxu0 0.0
      %525 = vmatprep.subr.mxu0 0.0
      %526 = vmatpush2.msra.mxu0 0.0
      %527 = vmatprep.subr.mxu0 0.0
      %528 = vmatpush2.msra.mxu0 0.0
      %529 = vmatprep.subr.mxu0 0.0
      %530 = vmatpush2.msra.mxu0 0.0
      %531 = vmatprep.subr.mxu0 0.0
      %532 = vmatpush2.msra.mxu0 0.0
      %533 = vmatprep.subr.mxu0 0.0
      %534 = vmatpush2.msra.mxu0 0.0
      %535 = vmatprep.subr.mxu0 0.0
      %536 = vmatpush2.msra.mxu0 0.0
      %537 = vmatprep.subr.mxu0 0.0
      %538 = vmatpush2.msra.mxu0 0.0
      %539 = vmatprep.subr.mxu0 0.0
      %540 = vmatpush2.msra.mxu0 0.0
      %541 = vmatprep.subr.mxu0 0.0
      %542 = vmatpush2.msra.mxu0 0.0
      %543 = vmatprep.subr.mxu0 0.0
      %544 = vmatpush2.msra.mxu0 0.0
      %545 = vmatprep.subr.mxu0 0.0
      %546 = vmatpush2.msra.mxu0 0.0
      %547 = vmatprep.subr.mxu0 0.0
      %548 = vmatpush2.msra.mxu0 0.0
      %549 = vmatprep.subr.mxu0 0.0
      %550 = vmatpush2.msra.mxu0 0.0
      %551 = vmatprep.mubr.f32.mxu0 0.0
      %552 = vmatmul.mubr.f32.gmra.mxu0 %v384
      %v553 = vpop.f32.mrf.mxu0
      %v554 = vadd.f32 %v484, %v553
      %v555 = vpop.f32.mrf.mxu0
      %556 = vdwg.mxu0
      %v557 = vld [vmem:[%s9] sm:$0x1]
      %v559 = vlaneseq
      %v560 = vshrl.u32 %v559, 7
      %v561 = vsub.s32 0, %v560
      %v562 = vrot.slane %v557, %v561
      %v564 = vadd.f32 %v554, %v562
      %v565 = vtanh.pop %v564
      %566 = vst [vmem:[#allocation2] sm:$0x3] %v384
      %567 = vst [vmem:[#allocation3] sm:$0x3] %v565
      %vm568 = vcmp.ge.f32.partialorder %v565, 0.0
      %v569 = vmul.f32 %v565, 0.01
      %v570 = vsel %vm568, %v565, %v569
      %v571 = vld [vmem:[#allocation12] sm:$0xff]
      %v572 = vld [vmem:[#allocation12 + $0x8] sm:$0xff]
      %v573 = vld [vmem:[#allocation12 + $0x10] sm:$0xff]
      %v574 = vld [vmem:[#allocation12 + $0x18] sm:$0xff]
      %v575 = vld [vmem:[#allocation12 + $0x20] sm:$0xff]
      %v576 = vld [vmem:[#allocation12 + $0x28] sm:$0xff]
      %v577 = vld [vmem:[#allocation12 + $0x30] sm:$0xff]
      %v578 = vld [vmem:[#allocation12 + $0x38] sm:$0xff]
      %v579 = vld [vmem:[#allocation12 + $0x40] sm:$0xff]
      %v580 = vld [vmem:[#allocation12 + $0x48] sm:$0xff]
      %v581 = vld [vmem:[#allocation12 + $0x50] sm:$0xff]
      %v582 = vld [vmem:[#allocation12 + $0x58] sm:$0xff]
      %v583 = vld [vmem:[#allocation12 + $0x60] sm:$0xff]
      %v584 = vld [vmem:[#allocation12 + $0x68] sm:$0xff]
      %v585 = vld [vmem:[#allocation12 + $0x70] sm:$0xff]
      %v586 = vld [vmem:[#allocation12 + $0x78] sm:$0xff]
      %v587 = vld [vmem:[#allocation12 + $0x80] sm:$0xff]
      %v588 = vld [vmem:[#allocation12 + $0x88] sm:$0xff]
      %v589 = vld [vmem:[#allocation12 + $0x90] sm:$0xff]
      %v590 = vld [vmem:[#allocation12 + $0x98] sm:$0xff]
      %v591 = vld [vmem:[#allocation12 + $0xa0] sm:$0xff]
      %v592 = vld [vmem:[#allocation12 + $0xa8] sm:$0xff]
      %v593 = vld [vmem:[#allocation12 + $0xb0] sm:$0xff]
      %v594 = vld [vmem:[#allocation12 + $0xb8] sm:$0xff]
      %v595 = vld [vmem:[#allocation12 + $0xc0] sm:$0xff]
      %v596 = vld [vmem:[#allocation12 + $0xc8] sm:$0xff]
      %v597 = vld [vmem:[#allocation12 + $0xd0] sm:$0xff]
      %v598 = vld [vmem:[#allocation12 + $0xd8] sm:$0xff]
      %v599 = vld [vmem:[#allocation12 + $0xe0] sm:$0xff]
      %v600 = vld [vmem:[#allocation12 + $0xe8] sm:$0xff]
      %v601 = vld [vmem:[#allocation12 + $0xf0] sm:$0xff]
      %v602 = vld [vmem:[#allocation12 + $0xf8] sm:$0xff]
      %v603 = vld [vmem:[%s11] sm:$0x3]
      %v605 = vlaneseq
      %v606 = vshrl.u32 %v605, 7
      %v607 = vsub.s32 0, %v606
      %v608 = vrot.slane %v603, %v607
      %v609 = vlaneseq
      %v610 = vshrl.u32 %v609, 7
      %v611 = vsub.s32 1, %v610
      %v612 = vrot.slane %v603, %v611
      %615 = vmatprep.subr.mxu0 %v602
      %616 = vmatpush1.msra.mxu0 %v601
      %617 = vmatprep.subr.mxu0 %v600
      %618 = vmatpush1.msra.mxu0 %v599
      %619 = vmatprep.subr.mxu0 %v598
      %620 = vmatpush1.msra.mxu0 %v597
      %621 = vmatprep.subr.mxu0 %v596
      %622 = vmatpush1.msra.mxu0 %v595
      %623 = vmatprep.subr.mxu0 %v594
      %624 = vmatpush1.msra.mxu0 %v593
      %625 = vmatprep.subr.mxu0 %v592
      %626 = vmatpush1.msra.mxu0 %v591
      %627 = vmatprep.subr.mxu0 %v590
      %628 = vmatpush1.msra.mxu0 %v589
      %629 = vmatprep.subr.mxu0 %v588
      %630 = vmatpush1.msra.mxu0 %v587
      %631 = vmatprep.subr.mxu0 %v586
      %632 = vmatpush1.msra.mxu0 %v585
      %633 = vmatprep.subr.mxu0 %v584
      %634 = vmatpush1.msra.mxu0 %v583
      %635 = vmatprep.subr.mxu0 %v582
      %636 = vmatpush1.msra.mxu0 %v581
      %637 = vmatprep.subr.mxu0 %v580
      %638 = vmatpush1.msra.mxu0 %v579
      %639 = vmatprep.subr.mxu0 %v578
      %640 = vmatpush1.msra.mxu0 %v577
      %641 = vmatprep.subr.mxu0 %v576
      %642 = vmatpush1.msra.mxu0 %v575
      %643 = vmatprep.subr.mxu0 %v574
      %644 = vmatpush1.msra.mxu0 %v573
      %645 = vmatprep.subr.mxu0 %v572
      %646 = vmatpush1.msra.mxu0 %v571
      %647 = vmatprep.subr.mxu0 0.0
      %648 = vmatpush2.msra.mxu0 0.0
      %649 = vmatprep.subr.mxu0 0.0
      %650 = vmatpush2.msra.mxu0 0.0
      %651 = vmatprep.subr.mxu0 0.0
      %652 = vmatpush2.msra.mxu0 0.0
      %653 = vmatprep.subr.mxu0 0.0
      %654 = vmatpush2.msra.mxu0 0.0
      %655 = vmatprep.subr.mxu0 0.0
      %656 = vmatpush2.msra.mxu0 0.0
      %657 = vmatprep.subr.mxu0 0.0
      %658 = vmatpush2.msra.mxu0 0.0
      %659 = vmatprep.subr.mxu0 0.0
      %660 = vmatpush2.msra.mxu0 0.0
      %661 = vmatprep.subr.mxu0 0.0
      %662 = vmatpush2.msra.mxu0 0.0
      %663 = vmatprep.subr.mxu0 0.0
      %664 = vmatpush2.msra.mxu0 0.0
      %665 = vmatprep.subr.mxu0 0.0
      %666 = vmatpush2.msra.mxu0 0.0
      %667 = vmatprep.subr.mxu0 0.0
      %668 = vmatpush2.msra.mxu0 0.0
      %669 = vmatprep.subr.mxu0 0.0
      %670 = vmatpush2.msra.mxu0 0.0
      %671 = vmatprep.subr.mxu0 0.0
      %672 = vmatpush2.msra.mxu0 0.0
      %673 = vmatprep.subr.mxu0 0.0
      %674 = vmatpush2.msra.mxu0 0.0
      %675 = vmatprep.subr.mxu0 0.0
      %676 = vmatpush2.msra.mxu0 0.0
      %677 = vmatprep.subr.mxu0 0.0
      %678 = vmatpush2.msra.mxu0 0.0
      %679 = vmatprep.mubr.f32.mxu0 0.0
      %680 = vmatmul.mubr.f32.gmra.mxu0 %v570
      %v681 = vpop.f32.mrf.mxu0
      %v682 = vadd.f32 %v608, %v681
      %v683 = vpop.f32.mrf.mxu0
      %v684 = vadd.f32 %v612, %v683
      %685 = vdwg.mxu0
      %vm686 = vcmp.ge.f32.partialorder %v682, 0.0
      %vm687 = vcmp.ge.f32.partialorder %v684, 0.0
      %v688 = vmul.f32 %v682, 0.01
      %v689 = vmul.f32 %v684, 0.01
      %v690 = vsel %vm686, %v682, %v688
      %v691 = vsel %vm687, %v684, %v689
      %v692 = vld [vmem:[#allocation13] sm:$0xff]
      %v693 = vld [vmem:[#allocation13 + $0x8] sm:$0xff]
      %v694 = vld [vmem:[#allocation13 + $0x10] sm:$0xff]
      %v695 = vld [vmem:[#allocation13 + $0x18] sm:$0xff]
      %v696 = vld [vmem:[#allocation13 + $0x20] sm:$0xff]
      %v697 = vld [vmem:[#allocation13 + $0x28] sm:$0xff]
      %v698 = vld [vmem:[#allocation13 + $0x30] sm:$0xff]
      %v699 = vld [vmem:[#allocation13 + $0x38] sm:$0xff]
      %v700 = vld [vmem:[#allocation13 + $0x40] sm:$0xff]
      %v701 = vld [vmem:[#allocation13 + $0x48] sm:$0xff]
      %v702 = vld [vmem:[#allocation13 + $0x50] sm:$0xff]
      %v703 = vld [vmem:[#allocation13 + $0x58] sm:$0xff]
      %v704 = vld [vmem:[#allocation13 + $0x60] sm:$0xff]
      %v705 = vld [vmem:[#allocation13 + $0x68] sm:$0xff]
      %v706 = vld [vmem:[#allocation13 + $0x70] sm:$0xff]
      %v707 = vld [vmem:[#allocation13 + $0x78] sm:$0xff]
      %v708 = vld [vmem:[#allocation13 + $0x80] sm:$0xff]
      %v709 = vld [vmem:[#allocation13 + $0x88] sm:$0xff]
      %v710 = vld [vmem:[#allocation13 + $0x90] sm:$0xff]
      %v711 = vld [vmem:[#allocation13 + $0x98] sm:$0xff]
      %v712 = vld [vmem:[#allocation13 + $0xa0] sm:$0xff]
      %v713 = vld [vmem:[#allocation13 + $0xa8] sm:$0xff]
      %v714 = vld [vmem:[#allocation13 + $0xb0] sm:$0xff]
      %v715 = vld [vmem:[#allocation13 + $0xb8] sm:$0xff]
      %v716 = vld [vmem:[#allocation13 + $0xc0] sm:$0xff]
      %v717 = vld [vmem:[#allocation13 + $0xc8] sm:$0xff]
      %v718 = vld [vmem:[#allocation13 + $0xd0] sm:$0xff]
      %v719 = vld [vmem:[#allocation13 + $0xd8] sm:$0xff]
      %v720 = vld [vmem:[#allocation13 + $0xe0] sm:$0xff]
      %v721 = vld [vmem:[#allocation13 + $0xe8] sm:$0xff]
      %v722 = vld [vmem:[#allocation13 + $0xf0] sm:$0xff]
      %v723 = vld [vmem:[#allocation13 + $0xf8] sm:$0xff]
      %v724 = vld [vmem:[#allocation13 + $0x100] sm:$0xff]
      %v725 = vld [vmem:[#allocation13 + $0x108] sm:$0xff]
      %v726 = vld [vmem:[#allocation13 + $0x110] sm:$0xff]
      %v727 = vld [vmem:[#allocation13 + $0x118] sm:$0xff]
      %v728 = vld [vmem:[#allocation13 + $0x120] sm:$0xff]
      %v729 = vld [vmem:[#allocation13 + $0x128] sm:$0xff]
      %v730 = vld [vmem:[#allocation13 + $0x130] sm:$0xff]
      %v731 = vld [vmem:[#allocation13 + $0x138] sm:$0xff]
      %v732 = vld [vmem:[#allocation13 + $0x140] sm:$0xff]
      %v733 = vld [vmem:[#allocation13 + $0x148] sm:$0xff]
      %v734 = vld [vmem:[#allocation13 + $0x150] sm:$0xff]
      %v735 = vld [vmem:[#allocation13 + $0x158] sm:$0xff]
      %v736 = vld [vmem:[#allocation13 + $0x160] sm:$0xff]
      %v737 = vld [vmem:[#allocation13 + $0x168] sm:$0xff]
      %v738 = vld [vmem:[#allocation13 + $0x170] sm:$0xff]
      %v739 = vld [vmem:[#allocation13 + $0x178] sm:$0xff]
      %v740 = vld [vmem:[#allocation13 + $0x180] sm:$0xff]
      %v741 = vld [vmem:[#allocation13 + $0x188] sm:$0xff]
      %v742 = vld [vmem:[#allocation13 + $0x190] sm:$0xff]
      %v743 = vld [vmem:[#allocation13 + $0x198] sm:$0xff]
      %v744 = vld [vmem:[#allocation13 + $0x1a0] sm:$0xff]
      %v745 = vld [vmem:[#allocation13 + $0x1a8] sm:$0xff]
      %v746 = vld [vmem:[#allocation13 + $0x1b0] sm:$0xff]
      %v747 = vld [vmem:[#allocation13 + $0x1b8] sm:$0xff]
      %v748 = vld [vmem:[#allocation13 + $0x1c0] sm:$0xff]
      %v749 = vld [vmem:[#allocation13 + $0x1c8] sm:$0xff]
      %v750 = vld [vmem:[#allocation13 + $0x1d0] sm:$0xff]
      %v751 = vld [vmem:[#allocation13 + $0x1d8] sm:$0xff]
      %v752 = vld [vmem:[#allocation13 + $0x1e0] sm:$0xff]
      %v753 = vld [vmem:[#allocation13 + $0x1e8] sm:$0xff]
      %v754 = vld [vmem:[#allocation13 + $0x1f0] sm:$0xff]
      %v755 = vld [vmem:[#allocation13 + $0x1f8] sm:$0xff]
      %v756 = vld [vmem:[#allocation13 + $0x200] sm:$0xff]
      %v757 = vld [vmem:[#allocation13 + $0x208] sm:$0xff]
      %v758 = vld [vmem:[#allocation13 + $0x210] sm:$0xff]
      %v759 = vld [vmem:[#allocation13 + $0x218] sm:$0xff]
      %v760 = vld [vmem:[#allocation13 + $0x220] sm:$0xff]
      %v761 = vld [vmem:[#allocation13 + $0x228] sm:$0xff]
      %v762 = vld [vmem:[#allocation13 + $0x230] sm:$0xff]
      %v763 = vld [vmem:[#allocation13 + $0x238] sm:$0xff]
      %v764 = vld [vmem:[#allocation13 + $0x240] sm:$0xff]
      %v765 = vld [vmem:[#allocation13 + $0x248] sm:$0xff]
      %v766 = vld [vmem:[#allocation13 + $0x250] sm:$0xff]
      %v767 = vld [vmem:[#allocation13 + $0x258] sm:$0xff]
      %v768 = vld [vmem:[#allocation13 + $0x260] sm:$0xff]
      %v769 = vld [vmem:[#allocation13 + $0x268] sm:$0xff]
      %v770 = vld [vmem:[#allocation13 + $0x270] sm:$0xff]
      %v771 = vld [vmem:[#allocation13 + $0x278] sm:$0xff]
      %v772 = vld [vmem:[#allocation13 + $0x280] sm:$0xff]
      %v773 = vld [vmem:[#allocation13 + $0x288] sm:$0xff]
      %v774 = vld [vmem:[#allocation13 + $0x290] sm:$0xff]
      %v775 = vld [vmem:[#allocation13 + $0x298] sm:$0xff]
      %v776 = vld [vmem:[#allocation13 + $0x2a0] sm:$0xff]
      %v777 = vld [vmem:[#allocation13 + $0x2a8] sm:$0xff]
      %v778 = vld [vmem:[#allocation13 + $0x2b0] sm:$0xff]
      %v779 = vld [vmem:[#allocation13 + $0x2b8] sm:$0xff]
      %v780 = vld [vmem:[#allocation13 + $0x2c0] sm:$0xff]
      %v781 = vld [vmem:[#allocation13 + $0x2c8] sm:$0xff]
      %v782 = vld [vmem:[#allocation13 + $0x2d0] sm:$0xff]
      %v783 = vld [vmem:[#allocation13 + $0x2d8] sm:$0xff]
      %v784 = vld [vmem:[#allocation13 + $0x2e0] sm:$0xff]
      %v785 = vld [vmem:[#allocation13 + $0x2e8] sm:$0xff]
      %v786 = vld [vmem:[#allocation13 + $0x2f0] sm:$0xff]
      %v787 = vld [vmem:[#allocation13 + $0x2f8] sm:$0xff]
      %v788 = vld [vmem:[#allocation13 + $0x300] sm:$0xff]
      %v789 = vld [vmem:[#allocation13 + $0x308] sm:$0xff]
      %v790 = vld [vmem:[#allocation13 + $0x310] sm:$0xff]
      %v791 = vld [vmem:[#allocation13 + $0x318] sm:$0xff]
      %v792 = vld [vmem:[#allocation13 + $0x320] sm:$0xff]
      %v793 = vld [vmem:[#allocation13 + $0x328] sm:$0xff]
      %v794 = vld [vmem:[#allocation13 + $0x330] sm:$0xff]
      %v795 = vld [vmem:[#allocation13 + $0x338] sm:$0xff]
      %v796 = vld [vmem:[#allocation13 + $0x340] sm:$0xff]
      %v797 = vld [vmem:[#allocation13 + $0x348] sm:$0xff]
      %v798 = vld [vmem:[#allocation13 + $0x350] sm:$0xff]
      %v799 = vld [vmem:[#allocation13 + $0x358] sm:$0xff]
      %v800 = vld [vmem:[#allocation13 + $0x360] sm:$0xff]
      %v801 = vld [vmem:[#allocation13 + $0x368] sm:$0xff]
      %v802 = vld [vmem:[#allocation13 + $0x370] sm:$0xff]
      %v803 = vld [vmem:[#allocation13 + $0x378] sm:$0xff]
      %v804 = vld [vmem:[#allocation13 + $0x380] sm:$0xff]
      %v805 = vld [vmem:[#allocation13 + $0x388] sm:$0xff]
      %v806 = vld [vmem:[#allocation13 + $0x390] sm:$0xff]
      %v807 = vld [vmem:[#allocation13 + $0x398] sm:$0xff]
      %v808 = vld [vmem:[#allocation13 + $0x3a0] sm:$0xff]
      %v809 = vld [vmem:[#allocation13 + $0x3a8] sm:$0xff]
      %v810 = vld [vmem:[#allocation13 + $0x3b0] sm:$0xff]
      %v811 = vld [vmem:[#allocation13 + $0x3b8] sm:$0xff]
      %v812 = vld [vmem:[#allocation13 + $0x3c0] sm:$0xff]
      %v813 = vld [vmem:[#allocation13 + $0x3c8] sm:$0xff]
      %v814 = vld [vmem:[#allocation13 + $0x3d0] sm:$0xff]
      %v815 = vld [vmem:[#allocation13 + $0x3d8] sm:$0xff]
      %v816 = vld [vmem:[#allocation13 + $0x3e0] sm:$0xff]
      %v817 = vld [vmem:[#allocation13 + $0x3e8] sm:$0xff]
      %v818 = vld [vmem:[#allocation13 + $0x3f0] sm:$0xff]
      %v819 = vld [vmem:[#allocation13 + $0x3f8] sm:$0xff]
      %v820 = vld [vmem:[%s13] sm:$0xf]
      %v822 = vlaneseq
      %v823 = vshrl.u32 %v822, 7
      %v824 = vsub.s32 0, %v823
      %v825 = vrot.slane %v820, %v824
      %v826 = vlaneseq
      %v827 = vshrl.u32 %v826, 7
      %v828 = vsub.s32 1, %v827
      %v829 = vrot.slane %v820, %v828
      %v830 = vlaneseq
      %v831 = vshrl.u32 %v830, 7
      %v832 = vsub.s32 2, %v831
      %v833 = vrot.slane %v820, %v832
      %v834 = vlaneseq
      %v835 = vshrl.u32 %v834, 7
      %v836 = vsub.s32 3, %v835
      %v837 = vrot.slane %v820, %v836
      %842 = vmatprep.subr.mxu0 %v753
      %843 = vmatpush1.msra.mxu0 %v752
      %844 = vmatprep.subr.mxu0 %v749
      %845 = vmatpush1.msra.mxu0 %v748
      %846 = vmatprep.subr.mxu0 %v745
      %847 = vmatpush1.msra.mxu0 %v744
      %848 = vmatprep.subr.mxu0 %v741
      %849 = vmatpush1.msra.mxu0 %v740
      %850 = vmatprep.subr.mxu0 %v737
      %851 = vmatpush1.msra.mxu0 %v736
      %852 = vmatprep.subr.mxu0 %v733
      %853 = vmatpush1.msra.mxu0 %v732
      %854 = vmatprep.subr.mxu0 %v729
      %855 = vmatpush1.msra.mxu0 %v728
      %856 = vmatprep.subr.mxu0 %v725
      %857 = vmatpush1.msra.mxu0 %v724
      %858 = vmatprep.subr.mxu0 %v721
      %859 = vmatpush1.msra.mxu0 %v720
      %860 = vmatprep.subr.mxu0 %v717
      %861 = vmatpush1.msra.mxu0 %v716
      %862 = vmatprep.subr.mxu0 %v713
      %863 = vmatpush1.msra.mxu0 %v712
      %864 = vmatprep.subr.mxu0 %v709
      %865 = vmatpush1.msra.mxu0 %v708
      %866 = vmatprep.subr.mxu0 %v705
      %867 = vmatpush1.msra.mxu0 %v704
      %868 = vmatprep.subr.mxu0 %v701
      %869 = vmatpush1.msra.mxu0 %v700
      %870 = vmatprep.subr.mxu0 %v697
      %871 = vmatpush1.msra.mxu0 %v696
      %872 = vmatprep.subr.mxu0 %v693
      %873 = vmatpush1.msra.mxu0 %v692
      %874 = vmatprep.subr.mxu0 %v817
      %875 = vmatpush2.msra.mxu0 %v816
      %876 = vmatprep.subr.mxu0 %v813
      %877 = vmatpush2.msra.mxu0 %v812
      %878 = vmatprep.subr.mxu0 %v809
      %879 = vmatpush2.msra.mxu0 %v808
      %880 = vmatprep.subr.mxu0 %v805
      %881 = vmatpush2.msra.mxu0 %v804
      %882 = vmatprep.subr.mxu0 %v801
      %883 = vmatpush2.msra.mxu0 %v800
      %884 = vmatprep.subr.mxu0 %v797
      %885 = vmatpush2.msra.mxu0 %v796
      %886 = vmatprep.subr.mxu0 %v793
      %887 = vmatpush2.msra.mxu0 %v792
      %888 = vmatprep.subr.mxu0 %v789
      %889 = vmatpush2.msra.mxu0 %v788
      %890 = vmatprep.subr.mxu0 %v785
      %891 = vmatpush2.msra.mxu0 %v784
      %892 = vmatprep.subr.mxu0 %v781
      %893 = vmatpush2.msra.mxu0 %v780
      %894 = vmatprep.subr.mxu0 %v777
      %895 = vmatpush2.msra.mxu0 %v776
      %896 = vmatprep.subr.mxu0 %v773
      %897 = vmatpush2.msra.mxu0 %v772
      %898 = vmatprep.subr.mxu0 %v769
      %899 = vmatpush2.msra.mxu0 %v768
      %900 = vmatprep.subr.mxu0 %v765
      %901 = vmatpush2.msra.mxu0 %v764
      %902 = vmatprep.subr.mxu0 %v761
      %903 = vmatpush2.msra.mxu0 %v760
      %904 = vmatprep.subr.mxu0 %v757
      %905 = vmatpush2.msra.mxu0 %v756
      %906 = vmatprep.mubr.f32.mxu0 %v691
      %907 = vmatmul.mubr.f32.gmra.mxu0 %v690
      %v908 = vpop.f32.mrf.mxu0
      %v909 = vadd.f32 %v825, %v908
      %v910 = vpop.f32.mrf.mxu0
      %v911 = vadd.f32 %v829, %v910
      %912 = vdwg.mxu0
      %913 = vmatprep.subr.mxu0 %v755
      %914 = vmatpush1.msra.mxu0 %v754
      %915 = vmatprep.subr.mxu0 %v751
      %916 = vmatpush1.msra.mxu0 %v750
      %917 = vmatprep.subr.mxu0 %v747
      %918 = vmatpush1.msra.mxu0 %v746
      %919 = vmatprep.subr.mxu0 %v743
      %920 = vmatpush1.msra.mxu0 %v742
      %921 = vmatprep.subr.mxu0 %v739
      %922 = vmatpush1.msra.mxu0 %v738
      %923 = vmatprep.subr.mxu0 %v735
      %924 = vmatpush1.msra.mxu0 %v734
      %925 = vmatprep.subr.mxu0 %v731
      %926 = vmatpush1.msra.mxu0 %v730
      %927 = vmatprep.subr.mxu0 %v727
      %928 = vmatpush1.msra.mxu0 %v726
      %929 = vmatprep.subr.mxu0 %v723
      %930 = vmatpush1.msra.mxu0 %v722
      %931 = vmatprep.subr.mxu0 %v719
      %932 = vmatpush1.msra.mxu0 %v718
      %933 = vmatprep.subr.mxu0 %v715
      %934 = vmatpush1.msra.mxu0 %v714
      %935 = vmatprep.subr.mxu0 %v711
      %936 = vmatpush1.msra.mxu0 %v710
      %937 = vmatprep.subr.mxu0 %v707
      %938 = vmatpush1.msra.mxu0 %v706
      %939 = vmatprep.subr.mxu0 %v703
      %940 = vmatpush1.msra.mxu0 %v702
      %941 = vmatprep.subr.mxu0 %v699
      %942 = vmatpush1.msra.mxu0 %v698
      %943 = vmatprep.subr.mxu0 %v695
      %944 = vmatpush1.msra.mxu0 %v694
      %945 = vmatprep.subr.mxu0 %v819
      %946 = vmatpush2.msra.mxu0 %v818
      %947 = vmatprep.subr.mxu0 %v815
      %948 = vmatpush2.msra.mxu0 %v814
      %949 = vmatprep.subr.mxu0 %v811
      %950 = vmatpush2.msra.mxu0 %v810
      %951 = vmatprep.subr.mxu0 %v807
      %952 = vmatpush2.msra.mxu0 %v806
      %953 = vmatprep.subr.mxu0 %v803
      %954 = vmatpush2.msra.mxu0 %v802
      %955 = vmatprep.subr.mxu0 %v799
      %956 = vmatpush2.msra.mxu0 %v798
      %957 = vmatprep.subr.mxu0 %v795
      %958 = vmatpush2.msra.mxu0 %v794
      %959 = vmatprep.subr.mxu0 %v791
      %960 = vmatpush2.msra.mxu0 %v790
      %961 = vmatprep.subr.mxu0 %v787
      %962 = vmatpush2.msra.mxu0 %v786
      %963 = vmatprep.subr.mxu0 %v783
      %964 = vmatpush2.msra.mxu0 %v782
      %965 = vmatprep.subr.mxu0 %v779
      %966 = vmatpush2.msra.mxu0 %v778
      %967 = vmatprep.subr.mxu0 %v775
      %968 = vmatpush2.msra.mxu0 %v774
      %969 = vmatprep.subr.mxu0 %v771
      %970 = vmatpush2.msra.mxu0 %v770
      %971 = vmatprep.subr.mxu0 %v767
      %972 = vmatpush2.msra.mxu0 %v766
      %973 = vmatprep.subr.mxu0 %v763
      %974 = vmatpush2.msra.mxu0 %v762
      %975 = vmatprep.subr.mxu0 %v759
      %976 = vmatpush2.msra.mxu0 %v758
      %977 = vmatprep.mubr.f32.mxu0 %v691
      %978 = vmatmul.mubr.f32.gmra.mxu0 %v690
      %v979 = vpop.f32.mrf.mxu0
      %v980 = vadd.f32 %v833, %v979
      %v981 = vpop.f32.mrf.mxu0
      %v982 = vadd.f32 %v837, %v981
      %983 = vdwg.mxu0
      %vm984 = vcmp.ge.f32.partialorder %v909, 0.0
      %vm985 = vcmp.ge.f32.partialorder %v911, 0.0
      %vm986 = vcmp.ge.f32.partialorder %v980, 0.0
      %vm987 = vcmp.ge.f32.partialorder %v982, 0.0
      %v988 = vmul.f32 %v909, 0.01
      %v989 = vmul.f32 %v911, 0.01
      %v990 = vmul.f32 %v980, 0.01
      %v991 = vmul.f32 %v982, 0.01
      %v992 = vsel %vm984, %v909, %v988
      %v993 = vsel %vm985, %v911, %v989
      %v994 = vsel %vm986, %v980, %v990
      %v995 = vsel %vm987, %v982, %v991
      %v996 = vld [vmem:[#allocation15] sm:$0xff]
      %v997 = vld [vmem:[#allocation15 + $0x8] sm:$0xff]
      %v998 = vld [vmem:[#allocation15 + $0x10] sm:$0xff]
      %v999 = vld [vmem:[#allocation15 + $0x18] sm:$0xff]
      %v1000 = vld [vmem:[#allocation15 + $0x20] sm:$0xff]
      %v1001 = vld [vmem:[#allocation15 + $0x28] sm:$0xff]
      %v1002 = vld [vmem:[#allocation15 + $0x30] sm:$0xff]
      %v1003 = vld [vmem:[#allocation15 + $0x38] sm:$0xff]
      %v1004 = vld [vmem:[#allocation15 + $0x40] sm:$0xff]
      %v1005 = vld [vmem:[#allocation15 + $0x48] sm:$0xff]
      %v1006 = vld [vmem:[#allocation15 + $0x50] sm:$0xff]
      %v1007 = vld [vmem:[#allocation15 + $0x58] sm:$0xff]
      %v1008 = vld [vmem:[#allocation15 + $0x60] sm:$0xff]
      %v1009 = vld [vmem:[#allocation15 + $0x68] sm:$0xff]
      %v1010 = vld [vmem:[#allocation15 + $0x70] sm:$0xff]
      %v1011 = vld [vmem:[#allocation15 + $0x78] sm:$0xff]
      %v1012 = vld [vmem:[#allocation15 + $0x80] sm:$0xff]
      %v1013 = vld [vmem:[#allocation15 + $0x88] sm:$0xff]
      %v1014 = vld [vmem:[#allocation15 + $0x90] sm:$0xff]
      %v1015 = vld [vmem:[#allocation15 + $0x98] sm:$0xff]
      %v1016 = vld [vmem:[#allocation15 + $0xa0] sm:$0xff]
      %v1017 = vld [vmem:[#allocation15 + $0xa8] sm:$0xff]
      %v1018 = vld [vmem:[#allocation15 + $0xb0] sm:$0xff]
      %v1019 = vld [vmem:[#allocation15 + $0xb8] sm:$0xff]
      %v1020 = vld [vmem:[#allocation15 + $0xc0] sm:$0xff]
      %v1021 = vld [vmem:[#allocation15 + $0xc8] sm:$0xff]
      %v1022 = vld [vmem:[#allocation15 + $0xd0] sm:$0xff]
      %v1023 = vld [vmem:[#allocation15 + $0xd8] sm:$0xff]
      %v1024 = vld [vmem:[#allocation15 + $0xe0] sm:$0xff]
      %v1025 = vld [vmem:[#allocation15 + $0xe8] sm:$0xff]
      %v1026 = vld [vmem:[#allocation15 + $0xf0] sm:$0xff]
      %v1027 = vld [vmem:[#allocation15 + $0xf8] sm:$0xff]
      %v1028 = vld [vmem:[#allocation15 + $0x100] sm:$0xff]
      %v1029 = vld [vmem:[#allocation15 + $0x108] sm:$0xff]
      %v1030 = vld [vmem:[#allocation15 + $0x110] sm:$0xff]
      %v1031 = vld [vmem:[#allocation15 + $0x118] sm:$0xff]
      %v1032 = vld [vmem:[#allocation15 + $0x120] sm:$0xff]
      %v1033 = vld [vmem:[#allocation15 + $0x128] sm:$0xff]
      %v1034 = vld [vmem:[#allocation15 + $0x130] sm:$0xff]
      %v1035 = vld [vmem:[#allocation15 + $0x138] sm:$0xff]
      %v1036 = vld [vmem:[#allocation15 + $0x140] sm:$0xff]
      %v1037 = vld [vmem:[#allocation15 + $0x148] sm:$0xff]
      %v1038 = vld [vmem:[#allocation15 + $0x150] sm:$0xff]
      %v1039 = vld [vmem:[#allocation15 + $0x158] sm:$0xff]
      %v1040 = vld [vmem:[#allocation15 + $0x160] sm:$0xff]
      %v1041 = vld [vmem:[#allocation15 + $0x168] sm:$0xff]
      %v1042 = vld [vmem:[#allocation15 + $0x170] sm:$0xff]
      %v1043 = vld [vmem:[#allocation15 + $0x178] sm:$0xff]
      %v1044 = vld [vmem:[#allocation15 + $0x180] sm:$0xff]
      %v1045 = vld [vmem:[#allocation15 + $0x188] sm:$0xff]
      %v1046 = vld [vmem:[#allocation15 + $0x190] sm:$0xff]
      %v1047 = vld [vmem:[#allocation15 + $0x198] sm:$0xff]
      %v1048 = vld [vmem:[#allocation15 + $0x1a0] sm:$0xff]
      %v1049 = vld [vmem:[#allocation15 + $0x1a8] sm:$0xff]
      %v1050 = vld [vmem:[#allocation15 + $0x1b0] sm:$0xff]
      %v1051 = vld [vmem:[#allocation15 + $0x1b8] sm:$0xff]
      %v1052 = vld [vmem:[#allocation15 + $0x1c0] sm:$0xff]
      %v1053 = vld [vmem:[#allocation15 + $0x1c8] sm:$0xff]
      %v1054 = vld [vmem:[#allocation15 + $0x1d0] sm:$0xff]
      %v1055 = vld [vmem:[#allocation15 + $0x1d8] sm:$0xff]
      %v1056 = vld [vmem:[#allocation15 + $0x1e0] sm:$0xff]
      %v1057 = vld [vmem:[#allocation15 + $0x1e8] sm:$0xff]
      %v1058 = vld [vmem:[#allocation15 + $0x1f0] sm:$0xff]
      %v1059 = vld [vmem:[#allocation15 + $0x1f8] sm:$0xff]
      %v1060 = vld [vmem:[#allocation15 + $0x200] sm:$0xff]
      %v1061 = vld [vmem:[#allocation15 + $0x208] sm:$0xff]
      %v1062 = vld [vmem:[#allocation15 + $0x210] sm:$0xff]
      %v1063 = vld [vmem:[#allocation15 + $0x218] sm:$0xff]
      %v1064 = vld [vmem:[#allocation15 + $0x220] sm:$0xff]
      %v1065 = vld [vmem:[#allocation15 + $0x228] sm:$0xff]
      %v1066 = vld [vmem:[#allocation15 + $0x230] sm:$0xff]
      %v1067 = vld [vmem:[#allocation15 + $0x238] sm:$0xff]
      %v1068 = vld [vmem:[#allocation15 + $0x240] sm:$0xff]
      %v1069 = vld [vmem:[#allocation15 + $0x248] sm:$0xff]
      %v1070 = vld [vmem:[#allocation15 + $0x250] sm:$0xff]
      %v1071 = vld [vmem:[#allocation15 + $0x258] sm:$0xff]
      %v1072 = vld [vmem:[#allocation15 + $0x260] sm:$0xff]
      %v1073 = vld [vmem:[#allocation15 + $0x268] sm:$0xff]
      %v1074 = vld [vmem:[#allocation15 + $0x270] sm:$0xff]
      %v1075 = vld [vmem:[#allocation15 + $0x278] sm:$0xff]
      %v1076 = vld [vmem:[#allocation15 + $0x280] sm:$0xff]
      %v1077 = vld [vmem:[#allocation15 + $0x288] sm:$0xff]
      %v1078 = vld [vmem:[#allocation15 + $0x290] sm:$0xff]
      %v1079 = vld [vmem:[#allocation15 + $0x298] sm:$0xff]
      %v1080 = vld [vmem:[#allocation15 + $0x2a0] sm:$0xff]
      %v1081 = vld [vmem:[#allocation15 + $0x2a8] sm:$0xff]
      %v1082 = vld [vmem:[#allocation15 + $0x2b0] sm:$0xff]
      %v1083 = vld [vmem:[#allocation15 + $0x2b8] sm:$0xff]
      %v1084 = vld [vmem:[#allocation15 + $0x2c0] sm:$0xff]
      %v1085 = vld [vmem:[#allocation15 + $0x2c8] sm:$0xff]
      %v1086 = vld [vmem:[#allocation15 + $0x2d0] sm:$0xff]
      %v1087 = vld [vmem:[#allocation15 + $0x2d8] sm:$0xff]
      %v1088 = vld [vmem:[#allocation15 + $0x2e0] sm:$0xff]
      %v1089 = vld [vmem:[#allocation15 + $0x2e8] sm:$0xff]
      %v1090 = vld [vmem:[#allocation15 + $0x2f0] sm:$0xff]
      %v1091 = vld [vmem:[#allocation15 + $0x2f8] sm:$0xff]
      %v1092 = vld [vmem:[#allocation15 + $0x300] sm:$0xff]
      %v1093 = vld [vmem:[#allocation15 + $0x308] sm:$0xff]
      %v1094 = vld [vmem:[#allocation15 + $0x310] sm:$0xff]
      %v1095 = vld [vmem:[#allocation15 + $0x318] sm:$0xff]
      %v1096 = vld [vmem:[#allocation15 + $0x320] sm:$0xff]
      %v1097 = vld [vmem:[#allocation15 + $0x328] sm:$0xff]
      %v1098 = vld [vmem:[#allocation15 + $0x330] sm:$0xff]
      %v1099 = vld [vmem:[#allocation15 + $0x338] sm:$0xff]
      %v1100 = vld [vmem:[#allocation15 + $0x340] sm:$0xff]
      %v1101 = vld [vmem:[#allocation15 + $0x348] sm:$0xff]
      %v1102 = vld [vmem:[#allocation15 + $0x350] sm:$0xff]
      %v1103 = vld [vmem:[#allocation15 + $0x358] sm:$0xff]
      %v1104 = vld [vmem:[#allocation15 + $0x360] sm:$0xff]
      %v1105 = vld [vmem:[#allocation15 + $0x368] sm:$0xff]
      %v1106 = vld [vmem:[#allocation15 + $0x370] sm:$0xff]
      %v1107 = vld [vmem:[#allocation15 + $0x378] sm:$0xff]
      %v1108 = vld [vmem:[#allocation15 + $0x380] sm:$0xff]
      %v1109 = vld [vmem:[#allocation15 + $0x388] sm:$0xff]
      %v1110 = vld [vmem:[#allocation15 + $0x390] sm:$0xff]
      %v1111 = vld [vmem:[#allocation15 + $0x398] sm:$0xff]
      %v1112 = vld [vmem:[#allocation15 + $0x3a0] sm:$0xff]
      %v1113 = vld [vmem:[#allocation15 + $0x3a8] sm:$0xff]
      %v1114 = vld [vmem:[#allocation15 + $0x3b0] sm:$0xff]
      %v1115 = vld [vmem:[#allocation15 + $0x3b8] sm:$0xff]
      %v1116 = vld [vmem:[#allocation15 + $0x3c0] sm:$0xff]
      %v1117 = vld [vmem:[#allocation15 + $0x3c8] sm:$0xff]
      %v1118 = vld [vmem:[#allocation15 + $0x3d0] sm:$0xff]
      %v1119 = vld [vmem:[#allocation15 + $0x3d8] sm:$0xff]
      %v1120 = vld [vmem:[#allocation15 + $0x3e0] sm:$0xff]
      %v1121 = vld [vmem:[#allocation15 + $0x3e8] sm:$0xff]
      %v1122 = vld [vmem:[#allocation15 + $0x3f0] sm:$0xff]
      %v1123 = vld [vmem:[#allocation15 + $0x3f8] sm:$0xff]
      %v1124 = vld [vmem:[%s15] sm:$0x3]
      %v1126 = vlaneseq
      %v1127 = vshrl.u32 %v1126, 7
      %v1128 = vsub.s32 0, %v1127
      %v1129 = vrot.slane %v1124, %v1128
      %v1130 = vlaneseq
      %v1131 = vshrl.u32 %v1130, 7
      %v1132 = vsub.s32 1, %v1131
      %v1133 = vrot.slane %v1124, %v1132
      %1136 = vmatprep.subr.mxu0 %v1027
      %1137 = vmatpush1.msra.mxu0 %v1026
      %1138 = vmatprep.subr.mxu0 %v1025
      %1139 = vmatpush1.msra.mxu0 %v1024
      %1140 = vmatprep.subr.mxu0 %v1023
      %1141 = vmatpush1.msra.mxu0 %v1022
      %1142 = vmatprep.subr.mxu0 %v1021
      %1143 = vmatpush1.msra.mxu0 %v1020
      %1144 = vmatprep.subr.mxu0 %v1019
      %1145 = vmatpush1.msra.mxu0 %v1018
      %1146 = vmatprep.subr.mxu0 %v1017
      %1147 = vmatpush1.msra.mxu0 %v1016
      %1148 = vmatprep.subr.mxu0 %v1015
      %1149 = vmatpush1.msra.mxu0 %v1014
      %1150 = vmatprep.subr.mxu0 %v1013
      %1151 = vmatpush1.msra.mxu0 %v1012
      %1152 = vmatprep.subr.mxu0 %v1011
      %1153 = vmatpush1.msra.mxu0 %v1010
      %1154 = vmatprep.subr.mxu0 %v1009
      %1155 = vmatpush1.msra.mxu0 %v1008
      %1156 = vmatprep.subr.mxu0 %v1007
      %1157 = vmatpush1.msra.mxu0 %v1006
      %1158 = vmatprep.subr.mxu0 %v1005
      %1159 = vmatpush1.msra.mxu0 %v1004
      %1160 = vmatprep.subr.mxu0 %v1003
      %1161 = vmatpush1.msra.mxu0 %v1002
      %1162 = vmatprep.subr.mxu0 %v1001
      %1163 = vmatpush1.msra.mxu0 %v1000
      %1164 = vmatprep.subr.mxu0 %v999
      %1165 = vmatpush1.msra.mxu0 %v998
      %1166 = vmatprep.subr.mxu0 %v997
      %1167 = vmatpush1.msra.mxu0 %v996
      %1168 = vmatprep.subr.mxu0 %v1059
      %1169 = vmatpush2.msra.mxu0 %v1058
      %1170 = vmatprep.subr.mxu0 %v1057
      %1171 = vmatpush2.msra.mxu0 %v1056
      %1172 = vmatprep.subr.mxu0 %v1055
      %1173 = vmatpush2.msra.mxu0 %v1054
      %1174 = vmatprep.subr.mxu0 %v1053
      %1175 = vmatpush2.msra.mxu0 %v1052
      %1176 = vmatprep.subr.mxu0 %v1051
      %1177 = vmatpush2.msra.mxu0 %v1050
      %1178 = vmatprep.subr.mxu0 %v1049
      %1179 = vmatpush2.msra.mxu0 %v1048
      %1180 = vmatprep.subr.mxu0 %v1047
      %1181 = vmatpush2.msra.mxu0 %v1046
      %1182 = vmatprep.subr.mxu0 %v1045
      %1183 = vmatpush2.msra.mxu0 %v1044
      %1184 = vmatprep.subr.mxu0 %v1043
      %1185 = vmatpush2.msra.mxu0 %v1042
      %1186 = vmatprep.subr.mxu0 %v1041
      %1187 = vmatpush2.msra.mxu0 %v1040
      %1188 = vmatprep.subr.mxu0 %v1039
      %1189 = vmatpush2.msra.mxu0 %v1038
      %1190 = vmatprep.subr.mxu0 %v1037
      %1191 = vmatpush2.msra.mxu0 %v1036
      %1192 = vmatprep.subr.mxu0 %v1035
      %1193 = vmatpush2.msra.mxu0 %v1034
      %1194 = vmatprep.subr.mxu0 %v1033
      %1195 = vmatpush2.msra.mxu0 %v1032
      %1196 = vmatprep.subr.mxu0 %v1031
      %1197 = vmatpush2.msra.mxu0 %v1030
      %1198 = vmatprep.subr.mxu0 %v1029
      %1199 = vmatpush2.msra.mxu0 %v1028
      %1200 = vmatprep.mubr.f32.mxu0 %v993
      %1201 = vmatmul.mubr.f32.gmra.mxu0 %v992
      %v1202 = vpop.f32.mrf.mxu0
      %v1203 = vadd.f32 %v1129, %v1202
      %v1204 = vpop.f32.mrf.mxu0
      %v1205 = vadd.f32 %v1133, %v1204
      %1206 = vdwg.mxu0
      %1207 = vmatprep.subr.mxu0 %v1091
      %1208 = vmatpush1.msra.mxu0 %v1090
      %1209 = vmatprep.subr.mxu0 %v1089
      %1210 = vmatpush1.msra.mxu0 %v1088
      %1211 = vmatprep.subr.mxu0 %v1087
      %1212 = vmatpush1.msra.mxu0 %v1086
      %1213 = vmatprep.subr.mxu0 %v1085
      %1214 = vmatpush1.msra.mxu0 %v1084
      %1215 = vmatprep.subr.mxu0 %v1083
      %1216 = vmatpush1.msra.mxu0 %v1082
      %1217 = vmatprep.subr.mxu0 %v1081
      %1218 = vmatpush1.msra.mxu0 %v1080
      %1219 = vmatprep.subr.mxu0 %v1079
      %1220 = vmatpush1.msra.mxu0 %v1078
      %1221 = vmatprep.subr.mxu0 %v1077
      %1222 = vmatpush1.msra.mxu0 %v1076
      %1223 = vmatprep.subr.mxu0 %v1075
      %1224 = vmatpush1.msra.mxu0 %v1074
      %1225 = vmatprep.subr.mxu0 %v1073
      %1226 = vmatpush1.msra.mxu0 %v1072
      %1227 = vmatprep.subr.mxu0 %v1071
      %1228 = vmatpush1.msra.mxu0 %v1070
      %1229 = vmatprep.subr.mxu0 %v1069
      %1230 = vmatpush1.msra.mxu0 %v1068
      %1231 = vmatprep.subr.mxu0 %v1067
      %1232 = vmatpush1.msra.mxu0 %v1066
      %1233 = vmatprep.subr.mxu0 %v1065
      %1234 = vmatpush1.msra.mxu0 %v1064
      %1235 = vmatprep.subr.mxu0 %v1063
      %1236 = vmatpush1.msra.mxu0 %v1062
      %1237 = vmatprep.subr.mxu0 %v1061
      %1238 = vmatpush1.msra.mxu0 %v1060
      %1239 = vmatprep.subr.mxu0 %v1123
      %1240 = vmatpush2.msra.mxu0 %v1122
      %1241 = vmatprep.subr.mxu0 %v1121
      %1242 = vmatpush2.msra.mxu0 %v1120
      %1243 = vmatprep.subr.mxu0 %v1119
      %1244 = vmatpush2.msra.mxu0 %v1118
      %1245 = vmatprep.subr.mxu0 %v1117
      %1246 = vmatpush2.msra.mxu0 %v1116
      %1247 = vmatprep.subr.mxu0 %v1115
      %1248 = vmatpush2.msra.mxu0 %v1114
      %1249 = vmatprep.subr.mxu0 %v1113
      %1250 = vmatpush2.msra.mxu0 %v1112
      %1251 = vmatprep.subr.mxu0 %v1111
      %1252 = vmatpush2.msra.mxu0 %v1110
      %1253 = vmatprep.subr.mxu0 %v1109
      %1254 = vmatpush2.msra.mxu0 %v1108
      %1255 = vmatprep.subr.mxu0 %v1107
      %1256 = vmatpush2.msra.mxu0 %v1106
      %1257 = vmatprep.subr.mxu0 %v1105
      %1258 = vmatpush2.msra.mxu0 %v1104
      %1259 = vmatprep.subr.mxu0 %v1103
      %1260 = vmatpush2.msra.mxu0 %v1102
      %1261 = vmatprep.subr.mxu0 %v1101
      %1262 = vmatpush2.msra.mxu0 %v1100
      %1263 = vmatprep.subr.mxu0 %v1099
      %1264 = vmatpush2.msra.mxu0 %v1098
      %1265 = vmatprep.subr.mxu0 %v1097
      %1266 = vmatpush2.msra.mxu0 %v1096
      %1267 = vmatprep.subr.mxu0 %v1095
      %1268 = vmatpush2.msra.mxu0 %v1094
      %1269 = vmatprep.subr.mxu0 %v1093
      %1270 = vmatpush2.msra.mxu0 %v1092
      %1271 = vmatprep.mubr.f32.mxu0 %v995
      %1272 = vmatmul.mubr.f32.gmra.mxu0 %v994
      %v1273 = vpop.f32.mrf.mxu0
      %v1274 = vadd.f32 %v1203, %v1273
      %v1275 = vpop.f32.mrf.mxu0
      %v1276 = vadd.f32 %v1205, %v1275
      %1277 = vdwg.mxu0
      %vm1278 = vcmp.ge.f32.partialorder %v1274, 0.0
      %vm1279 = vcmp.ge.f32.partialorder %v1276, 0.0
      %v1280 = vmul.f32 %v1274, 0.01
      %v1281 = vmul.f32 %v1276, 0.01
      %v1282 = vsel %vm1278, %v1274, %v1280
      %v1283 = vsel %vm1279, %v1276, %v1281
      %v1284 = vld [vmem:[#allocation16] sm:$0xff]
      %v1285 = vld [vmem:[#allocation16 + $0x8] sm:$0xff]
      %v1286 = vld [vmem:[#allocation16 + $0x10] sm:$0xff]
      %v1287 = vld [vmem:[#allocation16 + $0x18] sm:$0xff]
      %v1288 = vld [vmem:[#allocation16 + $0x20] sm:$0xff]
      %v1289 = vld [vmem:[#allocation16 + $0x28] sm:$0xff]
      %v1290 = vld [vmem:[#allocation16 + $0x30] sm:$0xff]
      %v1291 = vld [vmem:[#allocation16 + $0x38] sm:$0xff]
      %v1292 = vld [vmem:[#allocation16 + $0x40] sm:$0xff]
      %v1293 = vld [vmem:[#allocation16 + $0x48] sm:$0xff]
      %v1294 = vld [vmem:[#allocation16 + $0x50] sm:$0xff]
      %v1295 = vld [vmem:[#allocation16 + $0x58] sm:$0xff]
      %v1296 = vld [vmem:[#allocation16 + $0x60] sm:$0xff]
      %v1297 = vld [vmem:[#allocation16 + $0x68] sm:$0xff]
      %v1298 = vld [vmem:[#allocation16 + $0x70] sm:$0xff]
      %v1299 = vld [vmem:[#allocation16 + $0x78] sm:$0xff]
      %v1300 = vld [vmem:[#allocation16 + $0x80] sm:$0xff]
      %v1301 = vld [vmem:[#allocation16 + $0x88] sm:$0xff]
      %v1302 = vld [vmem:[#allocation16 + $0x90] sm:$0xff]
      %v1303 = vld [vmem:[#allocation16 + $0x98] sm:$0xff]
      %v1304 = vld [vmem:[#allocation16 + $0xa0] sm:$0xff]
      %v1305 = vld [vmem:[#allocation16 + $0xa8] sm:$0xff]
      %v1306 = vld [vmem:[#allocation16 + $0xb0] sm:$0xff]
      %v1307 = vld [vmem:[#allocation16 + $0xb8] sm:$0xff]
      %v1308 = vld [vmem:[#allocation16 + $0xc0] sm:$0xff]
      %v1309 = vld [vmem:[#allocation16 + $0xc8] sm:$0xff]
      %v1310 = vld [vmem:[#allocation16 + $0xd0] sm:$0xff]
      %v1311 = vld [vmem:[#allocation16 + $0xd8] sm:$0xff]
      %v1312 = vld [vmem:[#allocation16 + $0xe0] sm:$0xff]
      %v1313 = vld [vmem:[#allocation16 + $0xe8] sm:$0xff]
      %v1314 = vld [vmem:[#allocation16 + $0xf0] sm:$0xff]
      %v1315 = vld [vmem:[#allocation16 + $0xf8] sm:$0xff]
      %v1316 = vld [vmem:[%s17] sm:$0x1]
      %v1318 = vlaneseq
      %v1319 = vshrl.u32 %v1318, 7
      %v1320 = vsub.s32 0, %v1319
      %v1321 = vrot.slane %v1316, %v1320
      %1323 = vmatprep.subr.mxu0 0.0
      %1324 = vmatpush1.msra.mxu0 %v1299
      %1325 = vmatprep.subr.mxu0 0.0
      %1326 = vmatpush1.msra.mxu0 %v1298
      %1327 = vmatprep.subr.mxu0 0.0
      %1328 = vmatpush1.msra.mxu0 %v1297
      %1329 = vmatprep.subr.mxu0 0.0
      %1330 = vmatpush1.msra.mxu0 %v1296
      %1331 = vmatprep.subr.mxu0 0.0
      %1332 = vmatpush1.msra.mxu0 %v1295
      %1333 = vmatprep.subr.mxu0 0.0
      %1334 = vmatpush1.msra.mxu0 %v1294
      %1335 = vmatprep.subr.mxu0 0.0
      %1336 = vmatpush1.msra.mxu0 %v1293
      %1337 = vmatprep.subr.mxu0 0.0
      %1338 = vmatpush1.msra.mxu0 %v1292
      %1339 = vmatprep.subr.mxu0 0.0
      %1340 = vmatpush1.msra.mxu0 %v1291
      %1341 = vmatprep.subr.mxu0 0.0
      %1342 = vmatpush1.msra.mxu0 %v1290
      %1343 = vmatprep.subr.mxu0 0.0
      %1344 = vmatpush1.msra.mxu0 %v1289
      %1345 = vmatprep.subr.mxu0 0.0
      %1346 = vmatpush1.msra.mxu0 %v1288
      %1347 = vmatprep.subr.mxu0 0.0
      %1348 = vmatpush1.msra.mxu0 %v1287
      %1349 = vmatprep.subr.mxu0 0.0
      %1350 = vmatpush1.msra.mxu0 %v1286
      %1351 = vmatprep.subr.mxu0 0.0
      %1352 = vmatpush1.msra.mxu0 %v1285
      %1353 = vmatprep.subr.mxu0 0.0
      %1354 = vmatpush1.msra.mxu0 %v1284
      %1355 = vmatprep.subr.mxu0 0.0
      %1356 = vmatpush2.msra.mxu0 %v1315
      %1357 = vmatprep.subr.mxu0 0.0
      %1358 = vmatpush2.msra.mxu0 %v1314
      %1359 = vmatprep.subr.mxu0 0.0
      %1360 = vmatpush2.msra.mxu0 %v1313
      %1361 = vmatprep.subr.mxu0 0.0
      %1362 = vmatpush2.msra.mxu0 %v1312
      %1363 = vmatprep.subr.mxu0 0.0
      %1364 = vmatpush2.msra.mxu0 %v1311
      %1365 = vmatprep.subr.mxu0 0.0
      %1366 = vmatpush2.msra.mxu0 %v1310
      %1367 = vmatprep.subr.mxu0 0.0
      %1368 = vmatpush2.msra.mxu0 %v1309
      %1369 = vmatprep.subr.mxu0 0.0
      %1370 = vmatpush2.msra.mxu0 %v1308
      %1371 = vmatprep.subr.mxu0 0.0
      %1372 = vmatpush2.msra.mxu0 %v1307
      %1373 = vmatprep.subr.mxu0 0.0
      %1374 = vmatpush2.msra.mxu0 %v1306
      %1375 = vmatprep.subr.mxu0 0.0
      %1376 = vmatpush2.msra.mxu0 %v1305
      %1377 = vmatprep.subr.mxu0 0.0
      %1378 = vmatpush2.msra.mxu0 %v1304
      %1379 = vmatprep.subr.mxu0 0.0
      %1380 = vmatpush2.msra.mxu0 %v1303
      %1381 = vmatprep.subr.mxu0 0.0
      %1382 = vmatpush2.msra.mxu0 %v1302
      %1383 = vmatprep.subr.mxu0 0.0
      %1384 = vmatpush2.msra.mxu0 %v1301
      %1385 = vmatprep.subr.mxu0 0.0
      %1386 = vmatpush2.msra.mxu0 %v1300
      %1387 = vmatprep.mubr.f32.mxu0 %v1283
      %1388 = vmatmul.mubr.f32.gmra.mxu0 %v1282
      %v1389 = vpop.f32.mrf.mxu0
      %v1390 = vadd.f32 %v1321, %v1389
      %v1391 = vpop.f32.mrf.mxu0
      %1392 = vdwg.mxu0
      %s1393 = scalar_lea.vmem [#allocation18], %s183
      %1394 = vst [vmem:[%s1393] sm:$0x3] %v1390
    $region110: #{rnn_forward.1} parent=1 // loop_footer
      %s182 = sadd.s32 1, %s178
    $region111: #{rnn_forward.1} parent=1 // loop_footer_branch
      %177 = sbr.rel target = $region107
    $region112: #{rnn_forward.1} parent=1 // loop_exit
      _
    %v1395 = vld [vmem:[#allocation2] sm:$0x3]
    %1396 = vst [vmem:[#allocation19] sm:$0x3] %v1395
    %v1397 = vld [vmem:[#allocation3] sm:$0x3]
    %s1398 = scalar_lea.vmem [#allocation19], 2
    %1399 = vst [vmem:[%s1398] sm:$0x3] %v1397
    // Predicated region
    $region113: #{rnn_forward.1} parent=1 // pred_check
      _
    $region114: #{rnn_forward.1} parent=1 // pred_check_branch
      %1401 = sbr.rel (0) target = $region116
    $region115: #{rnn_forward.1} parent=1 // pred_region
      %s1403 = ssub.s32 256, 256
      %1404 = vsyncadd [#allocation6], %s1403
      %s1405 = sshll.u32 [#allocation18], 4
      %s1406 = int_to_ptr.vmem [resolvable:$true] %s1405
      %1411 = dma.vmem_to_hbm [thread:$0]  %s1406, 256, %s18, [#allocation6], 32, 32, 2
    $region116: #{rnn_forward.1} parent=1 // pred_fallthru
      _
    // Predicated region
    $region117: #{rnn_forward.1} parent=1 // pred_check
      _
    $region118: #{rnn_forward.1} parent=1 // pred_check_branch
      %1413 = sbr.rel (0) target = $region120
    $region119: #{rnn_forward.1} parent=1 // pred_region
      %s1415 = ssub.s32 64, 64
      %1416 = vsyncadd [#allocation20], %s1415
      %s1417 = sshll.u32 [#allocation19], 4
      %s1418 = int_to_ptr.vmem [resolvable:$true] %s1417
      %1423 = dma.vmem_to_hbm [thread:$0]  %s1418, 64, %s19, [#allocation20], 32, 32, 2
    $region120: #{rnn_forward.1} parent=1 // pred_fallthru
      _
    // Predicated region
    $region121: #{rnn_forward.1} parent=1 // pred_check
      _
    $region122: #{rnn_forward.1} parent=1 // pred_check_branch
      %1425 = sbr.rel (0) target = $region124
    $region123: #{rnn_forward.1} parent=1 // pred_region
      %1426 = dma.done [#allocation6], 256
    $region124: #{rnn_forward.1} parent=1 // pred_fallthru
      _
    // Predicated region
    $region125: #{rnn_forward.1} parent=1 // pred_check
      _
    $region126: #{rnn_forward.1} parent=1 // pred_check_branch
      %1428 = sbr.rel (0) target = $region128
    $region127: #{rnn_forward.1} parent=1 // pred_region
      %1429 = dma.done [#allocation20], 64
    $region128: #{rnn_forward.1} parent=1 // pred_fallthru
      _
    %1430 = vsyncpa [#allocation5], 1
    %1431 = vsyncpa [#allocation8], 1
    %1432 = vsyncpa [#allocation11], 1
    %1433 = vsyncpa [#allocation14], 1
    %1434 = vsyncpa [#allocation17], 1
    %1435 = vsyncpa [#allocation6], 1
    %1436 = vsyncpa [#allocation20], 1

</llo_original>
